<compile_context>
chip_gen: v6e
topology: v6e:2x2x1
jax: 0.10.0
libtpu: 0.0.40
codegen_flags: <defaults>
</compile_context>

<pallas_src>
import numpy as np
import jax
import jax.numpy as jnp
from jax.experimental import pallas as pl
from jax.experimental.pallas import tpu as pltpu

LRELU_SLOPE = 0.2
BN_EPS = 1e-5
LANES = 128


def _pad8(n):
    return ((n + 7) // 8) * 8


def _pad_lanes(n):
    return ((n + LANES - 1) // LANES) * LANES


def _pad_to(a, shape):
    return jnp.pad(a, [(0, s - d) for d, s in zip(a.shape, shape)])


def _lrelu(y):
    return jnp.where(y >= 0, y, LRELU_SLOPE * y)


def _fold_bn(bn):
    scale = bn['gamma'] / jnp.sqrt(bn['var'] + BN_EPS)
    shift = bn['beta'] - bn['mean'] * scale
    return scale, shift


# ----------------------------- parameter init ------------------------------

def init_params(key, num_joints_in, channels, latten, filter_widths):
    keys = iter(jax.random.split(key, 64))

    def w(shape, s=0.05):
        return s * jax.random.normal(next(keys), shape, jnp.float32)

    def bn(C):
        return dict(
            gamma=1.0 + 0.1 * jax.random.normal(next(keys), (C,), jnp.float32),
            beta=0.1 * jax.random.normal(next(keys), (C,), jnp.float32),
            mean=0.1 * jax.random.normal(next(keys), (C,), jnp.float32),
            var=1.0 + 0.1 * jnp.abs(jax.random.normal(next(keys), (C,), jnp.float32)),
        )

    params = dict(
        expand_w=w((channels, num_joints_in, filter_widths[0])),
        expand_bn=bn(channels),
        convs=[], bns=[],
        shrink_w=w((latten, channels, 1)),
        shrink_b=w((latten,)),
    )
    for i in range(1, len(filter_widths)):
        params['convs'].append(w((channels, channels, filter_widths[i])))
        params['bns'].append(bn(channels))
        params['convs'].append(w((channels, channels, 1)))
        params['bns'].append(bn(channels))
    return params


# --------------------------- fused Pallas forward ---------------------------

def build_fused_forward(params, filter_widths, B, Cin, T):
    """Fold BN into weights, pad to (8,128)-friendly tiles once, and return a
    forward(x) function that runs the whole block as a single pallas_call."""
    channels = params['expand_w'].shape[0]
    latten = params['shrink_w'].shape[0]
    fw0 = filter_widths[0]

    K0 = Cin * fw0
    Kp = _pad_lanes(K0)
    Cp = _pad_lanes(channels)
    Lp = _pad_lanes(latten)

    # per-stage (per-batch) time sizes, padded to 8 sublanes
    T_sizes = [T // fw0]
    for fw in filter_widths[1:]:
        T_sizes.append(T_sizes[-1] // fw)
    Tp_sizes = [_pad8(t) for t in T_sizes]
    T1, T1p = T_sizes[0], Tp_sizes[0]
    Tlast, Tlastp = T_sizes[-1], Tp_sizes[-1]
    inner_fws = tuple(filter_widths[1:])

    # ---- fold BN into weights / biases, pad, build selection matrices ------
    w_ops = []

    scale0, shift0 = _fold_bn(params['expand_bn'])
    w0 = params['expand_w'].reshape(channels, K0).T * scale0[None, :]   # (K0, C)
    w_ops.append(_pad_to(w0, (Kp, Cp)))
    w_ops.append(_pad_to(shift0[None, :], (1, Cp)))

    for i, fw in enumerate(inner_fws):
        Tc, Tcp = T_sizes[i], Tp_sizes[i]
        Tn, Tnp = T_sizes[i + 1], Tp_sizes[i + 1]
        # 0/1 row-selection matrices: tap j picks time rows fw*t + j
        for j in range(fw):
            P = np.zeros((Tnp, Tcp), np.float32)
            P[np.arange(Tn), fw * np.arange(Tn) + j] = 1.0
            w_ops.append(jnp.asarray(P))
        s1, b1 = _fold_bn(params['bns'][2 * i])
        wt = params['convs'][2 * i]                                     # (C, C, fw)
        for j in range(fw):
            w_ops.append(_pad_to(wt[:, :, j].T * s1[None, :], (Cp, Cp)))
        w_ops.append(_pad_to(b1[None, :], (1, Cp)))
        s2, b2 = _fold_bn(params['bns'][2 * i + 1])
        w2 = params['convs'][2 * i + 1][:, :, 0].T * s2[None, :]        # (C, C)
        w_ops.append(_pad_to(w2, (Cp, Cp)))
        w_ops.append(_pad_to(b2[None, :], (1, Cp)))

    ws = params['shrink_w'][:, :, 0].T                                  # (C, latten)
    w_ops.append(_pad_to(ws, (Cp, Lp)))
    w_ops.append(_pad_to(params['shrink_b'][None, :], (1, Lp)))

    # ---- fused kernel: whole forward for one batch element per grid step ---
    def kernel(*refs):
        *ins, o_ref = refs
        it = iter(ins)
        x = next(it)[0]                                                 # (T1p, Kp)
        w0_ = next(it)[...]
        b0_ = next(it)[...]
        h = _lrelu(jnp.dot(x, w0_, preferred_element_type=jnp.float32) + b0_)
        for fw in inner_fws:
            Ps = [next(it)[...] for _ in range(fw)]
            Wt = [next(it)[...] for _ in range(fw)]
            b1_ = next(it)[...]
            w2_ = next(it)[...]
            b2_ = next(it)[...]
            taps = [jnp.dot(P, h, preferred_element_type=jnp.float32) for P in Ps]
            y = b1_ + sum(jnp.dot(t, w, preferred_element_type=jnp.float32)
                          for t, w in zip(taps, Wt))
            y = _lrelu(y)
            y = _lrelu(jnp.dot(y, w2_, preferred_element_type=jnp.float32) + b2_)
            h = taps[fw // 2] + y                                       # residual
        ws_ = next(it)[...]
        bs_ = next(it)[...]
        o_ref[0] = jnp.dot(h, ws_, preferred_element_type=jnp.float32) + bs_

    in_specs = [pl.BlockSpec((1, T1p, Kp), lambda b: (b, 0, 0))]
    for op in w_ops:
        in_specs.append(pl.BlockSpec(op.shape, lambda b: (0, 0)))
    out_spec = pl.BlockSpec((1, Tlastp, Lp), lambda b: (b, 0, 0))

    fused = pl.pallas_call(
        kernel,
        out_shape=jax.ShapeDtypeStruct((B, Tlastp, Lp), jnp.float32),
        grid=(B,),
        in_specs=in_specs,
        out_specs=out_spec,
        compiler_params=pltpu.CompilerParams(
            dimension_semantics=("parallel",)),
    )

    def forward(x):
        # im2col for the stride==kernel expand conv; padded once to full tiles.
        xr = x[:, :, :T1 * fw0].reshape(B, Cin, T1, fw0)
        xr = jnp.transpose(xr, (0, 2, 1, 3)).reshape(B, T1, K0)
        xr = _pad_to(xr, (B, T1p, Kp))
        out = fused(xr, *w_ops)                                         # (B,Tlastp,Lp)
        out = out[:, :Tlast, :latten].reshape(B * Tlast, latten)
        return out[:, None, :]                                          # (B*T, 1, L)

    # TODO(synk): training-mode BatchNorm statistics / dropout are stateful &
    # stochastic; only eval-mode forward semantics are implemented here.
    return forward


# --------------------------- pure-JAX reference -----------------------------

def forward_reference(x, params, filter_widths):
    def conv1d(a, w, stride):
        return jax.lax.conv_general_dilated(
            a, w, (stride,), 'VALID', dimension_numbers=('NCH', 'OIH', 'NCH'))

    def bn(a, p):
        scale = p['gamma'] / jnp.sqrt(p['var'] + BN_EPS)
        shift = p['beta'] - p['mean'] * scale
        return a * scale[None, :, None] + shift[None, :, None]

    def lrelu(a):
        return jnp.where(a >= 0, a, LRELU_SLOPE * a)

    h = lrelu(bn(conv1d(x, params['expand_w'], filter_widths[0]), params['expand_bn']))
    for i in range(1, len(filter_widths)):
        fw = filter_widths[i]
        res = h[:, :, fw // 2::fw]
        h = lrelu(bn(conv1d(h, params['convs'][2 * (i - 1)], fw),
                     params['bns'][2 * (i - 1)]))
        h = res[:, :, :h.shape[2]] + lrelu(bn(conv1d(h, params['convs'][2 * (i - 1) + 1], 1),
                                              params['bns'][2 * (i - 1) + 1]))
    h = conv1d(h, params['shrink_w'], 1) + params['shrink_b'][None, :, None]
    h = jnp.transpose(h, (0, 2, 1))
    B, T, L = h.shape
    return h.reshape(B * T, L)[:, None, :]


# ---------------------------------- main ------------------------------------

if __name__ == "__main__":
    key = jax.random.PRNGKey(0)
    k_x, k_p = jax.random.split(key)

    # Small shapes consistent with the module: num_joints_in=16 input channels,
    # T=27 frames, filter_widths=[3,3], channels=64, latten_features=32.
    B, Cin, T = 2, 16, 27
    channels, latten = 64, 32
    filter_widths = [3, 3]

    x = jax.random.normal(k_x, (B, Cin, T), jnp.float32)
    params = init_params(k_p, Cin, channels, latten, filter_widths)

    fwd = jax.jit(build_fused_forward(params, filter_widths, B, Cin, T))
    out = jax.block_until_ready(fwd(x))

    ref = forward_reference(x, params, filter_widths)
    assert out.shape == ref.shape, (out.shape, ref.shape)
    np.testing.assert_allclose(np.asarray(out), np.asarray(ref), rtol=2e-4, atol=2e-4)

    print("KERNEL_OK")
</pallas_src>

<mosaic_0001>
module attributes {stable_mosaic.version = 11 : i64} {
  func.func @kernel(%arg0: i32, %arg1: memref<1x16x128xf32, #tpu.memory_space<vmem>>, %arg2: memref<128x128xf32, #tpu.memory_space<vmem>>, %arg3: memref<1x128xf32, #tpu.memory_space<vmem>>, %arg4: memref<8x16xf32, #tpu.memory_space<vmem>>, %arg5: memref<8x16xf32, #tpu.memory_space<vmem>>, %arg6: memref<8x16xf32, #tpu.memory_space<vmem>>, %arg7: memref<128x128xf32, #tpu.memory_space<vmem>>, %arg8: memref<128x128xf32, #tpu.memory_space<vmem>>, %arg9: memref<128x128xf32, #tpu.memory_space<vmem>>, %arg10: memref<1x128xf32, #tpu.memory_space<vmem>>, %arg11: memref<128x128xf32, #tpu.memory_space<vmem>>, %arg12: memref<1x128xf32, #tpu.memory_space<vmem>>, %arg13: memref<128x128xf32, #tpu.memory_space<vmem>>, %arg14: memref<1x128xf32, #tpu.memory_space<vmem>>, %arg15: memref<1x8x128xf32, #tpu.memory_space<vmem>>) attributes {dimension_semantics = [#tpu.dimension_semantics<parallel>], iteration_bounds = array<i64: 2>, scalar_prefetch = 0 : i64, scratch_operands = 0 : i64, tpu.core_type = #tpu.core_type<tc>, window_params = [{transform_indices = @transform_0, window_bounds = array<i64: 1, 16, 128>}, {pipeline_mode = #tpu.pipeline_mode<synchronous>, transform_indices = @transform_1, window_bounds = array<i64: 128, 128>}, {pipeline_mode = #tpu.pipeline_mode<synchronous>, transform_indices = @transform_2, window_bounds = array<i64: 1, 128>}, {pipeline_mode = #tpu.pipeline_mode<synchronous>, transform_indices = @transform_3, window_bounds = array<i64: 8, 16>}, {pipeline_mode = #tpu.pipeline_mode<synchronous>, transform_indices = @transform_4, window_bounds = array<i64: 8, 16>}, {pipeline_mode = #tpu.pipeline_mode<synchronous>, transform_indices = @transform_5, window_bounds = array<i64: 8, 16>}, {pipeline_mode = #tpu.pipeline_mode<synchronous>, transform_indices = @transform_6, window_bounds = array<i64: 128, 128>}, {pipeline_mode = #tpu.pipeline_mode<synchronous>, transform_indices = @transform_7, window_bounds = array<i64: 128, 128>}, {pipeline_mode = #tpu.pipeline_mode<synchronous>, transform_indices = @transform_8, window_bounds = array<i64: 128, 128>}, {pipeline_mode = #tpu.pipeline_mode<synchronous>, transform_indices = @transform_9, window_bounds = array<i64: 1, 128>}, {pipeline_mode = #tpu.pipeline_mode<synchronous>, transform_indices = @transform_10, window_bounds = array<i64: 128, 128>}, {pipeline_mode = #tpu.pipeline_mode<synchronous>, transform_indices = @transform_11, window_bounds = array<i64: 1, 128>}, {pipeline_mode = #tpu.pipeline_mode<synchronous>, transform_indices = @transform_12, window_bounds = array<i64: 128, 128>}, {pipeline_mode = #tpu.pipeline_mode<synchronous>, transform_indices = @transform_13, window_bounds = array<i64: 1, 128>}, {transform_indices = @transform_14, window_bounds = array<i64: 1, 8, 128>}]} {
    %c0 = arith.constant 0 : index
    %c0_0 = arith.constant 0 : index
    %c0_1 = arith.constant 0 : index
    %0 = vector.load %arg1[%c0, %c0_0, %c0_1] : memref<1x16x128xf32, #tpu.memory_space<vmem>>, vector<1x16x128xf32>
    %1 = vector.shape_cast %0 : vector<1x16x128xf32> to vector<16x128xf32>
    %c0_2 = arith.constant 0 : index
    %c0_3 = arith.constant 0 : index
    %2 = vector.load %arg2[%c0_2, %c0_3] : memref<128x128xf32, #tpu.memory_space<vmem>>, vector<128x128xf32>
    %c0_4 = arith.constant 0 : index
    %c0_5 = arith.constant 0 : index
    %3 = vector.load %arg3[%c0_4, %c0_5] : memref<1x128xf32, #tpu.memory_space<vmem>>, vector<1x128xf32>
    %cst = arith.constant dense<0.000000e+00> : vector<16x128xf32>
    %4 = tpu.matmul %1, %2, %cst {dimension_numbers = #tpu.dot_dimension_numbers<[1], [0], [0], [1], [0, 0, 1, 1], [], []>} : vector<16x128xf32>, vector<128x128xf32>, vector<16x128xf32> -> vector<16x128xf32>
    %5 = vector.broadcast %3 : vector<1x128xf32> to vector<16x128xf32>
    %6 = arith.addf %4, %5 : vector<16x128xf32>
    %cst_6 = arith.constant 0.000000e+00 : f32
    %7 = vector.broadcast %cst_6 : f32 to vector<16x128xf32>
    %8 = arith.cmpf oge, %6, %7 : vector<16x128xf32>
    %cst_7 = arith.constant 2.000000e-01 : f32
    %9 = vector.broadcast %cst_7 : f32 to vector<16x128xf32>
    %10 = arith.mulf %9, %6 : vector<16x128xf32>
    %11 = arith.select %8, %6, %10 : vector<16x128xi1>, vector<16x128xf32>
    %c0_8 = arith.constant 0 : index
    %c0_9 = arith.constant 0 : index
    %12 = vector.load %arg4[%c0_8, %c0_9] : memref<8x16xf32, #tpu.memory_space<vmem>>, vector<8x16xf32>
    %c0_10 = arith.constant 0 : index
    %c0_11 = arith.constant 0 : index
    %13 = vector.load %arg5[%c0_10, %c0_11] : memref<8x16xf32, #tpu.memory_space<vmem>>, vector<8x16xf32>
    %c0_12 = arith.constant 0 : index
    %c0_13 = arith.constant 0 : index
    %14 = vector.load %arg6[%c0_12, %c0_13] : memref<8x16xf32, #tpu.memory_space<vmem>>, vector<8x16xf32>
    %c0_14 = arith.constant 0 : index
    %c0_15 = arith.constant 0 : index
    %15 = vector.load %arg7[%c0_14, %c0_15] : memref<128x128xf32, #tpu.memory_space<vmem>>, vector<128x128xf32>
    %c0_16 = arith.constant 0 : index
    %c0_17 = arith.constant 0 : index
    %16 = vector.load %arg8[%c0_16, %c0_17] : memref<128x128xf32, #tpu.memory_space<vmem>>, vector<128x128xf32>
    %c0_18 = arith.constant 0 : index
    %c0_19 = arith.constant 0 : index
    %17 = vector.load %arg9[%c0_18, %c0_19] : memref<128x128xf32, #tpu.memory_space<vmem>>, vector<128x128xf32>
    %c0_20 = arith.constant 0 : index
    %c0_21 = arith.constant 0 : index
    %18 = vector.load %arg10[%c0_20, %c0_21] : memref<1x128xf32, #tpu.memory_space<vmem>>, vector<1x128xf32>
    %c0_22 = arith.constant 0 : index
    %c0_23 = arith.constant 0 : index
    %19 = vector.load %arg11[%c0_22, %c0_23] : memref<128x128xf32, #tpu.memory_space<vmem>>, vector<128x128xf32>
    %c0_24 = arith.constant 0 : index
    %c0_25 = arith.constant 0 : index
    %20 = vector.load %arg12[%c0_24, %c0_25] : memref<1x128xf32, #tpu.memory_space<vmem>>, vector<1x128xf32>
    %cst_26 = arith.constant dense<0.000000e+00> : vector<8x128xf32>
    %21 = tpu.matmul %12, %11, %cst_26 {dimension_numbers = #tpu.dot_dimension_numbers<[1], [0], [0], [1], [0, 0, 1, 1], [], []>} : vector<8x16xf32>, vector<16x128xf32>, vector<8x128xf32> -> vector<8x128xf32>
    %cst_27 = arith.constant dense<0.000000e+00> : vector<8x128xf32>
    %22 = tpu.matmul %13, %11, %cst_27 {dimension_numbers = #tpu.dot_dimension_numbers<[1], [0], [0], [1], [0, 0, 1, 1], [], []>} : vector<8x16xf32>, vector<16x128xf32>, vector<8x128xf32> -> vector<8x128xf32>
    %cst_28 = arith.constant dense<0.000000e+00> : vector<8x128xf32>
    %23 = tpu.matmul %14, %11, %cst_28 {dimension_numbers = #tpu.dot_dimension_numbers<[1], [0], [0], [1], [0, 0, 1, 1], [], []>} : vector<8x16xf32>, vector<16x128xf32>, vector<8x128xf32> -> vector<8x128xf32>
    %cst_29 = arith.constant dense<0.000000e+00> : vector<8x128xf32>
    %24 = tpu.matmul %21, %15, %cst_29 {dimension_numbers = #tpu.dot_dimension_numbers<[1], [0], [0], [1], [0, 0, 1, 1], [], []>} : vector<8x128xf32>, vector<128x128xf32>, vector<8x128xf32> -> vector<8x128xf32>
    %cst_30 = arith.constant 0.000000e+00 : f32
    %25 = vector.broadcast %cst_30 : f32 to vector<8x128xf32>
    %26 = arith.addf %25, %24 : vector<8x128xf32>
    %cst_31 = arith.constant dense<0.000000e+00> : vector<8x128xf32>
    %27 = tpu.matmul %22, %16, %cst_31 {dimension_numbers = #tpu.dot_dimension_numbers<[1], [0], [0], [1], [0, 0, 1, 1], [], []>} : vector<8x128xf32>, vector<128x128xf32>, vector<8x128xf32> -> vector<8x128xf32>
    %28 = arith.addf %26, %27 : vector<8x128xf32>
    %cst_32 = arith.constant dense<0.000000e+00> : vector<8x128xf32>
    %29 = tpu.matmul %23, %17, %cst_32 {dimension_numbers = #tpu.dot_dimension_numbers<[1], [0], [0], [1], [0, 0, 1, 1], [], []>} : vector<8x128xf32>, vector<128x128xf32>, vector<8x128xf32> -> vector<8x128xf32>
    %30 = arith.addf %28, %29 : vector<8x128xf32>
    %31 = vector.broadcast %18 : vector<1x128xf32> to vector<8x128xf32>
    %32 = arith.addf %31, %30 : vector<8x128xf32>
    %cst_33 = arith.constant 0.000000e+00 : f32
    %33 = vector.broadcast %cst_33 : f32 to vector<8x128xf32>
    %34 = arith.cmpf oge, %32, %33 : vector<8x128xf32>
    %cst_34 = arith.constant 2.000000e-01 : f32
    %35 = vector.broadcast %cst_34 : f32 to vector<8x128xf32>
    %36 = arith.mulf %35, %32 : vector<8x128xf32>
    %37 = arith.select %34, %32, %36 : vector<8x128xi1>, vector<8x128xf32>
    %cst_35 = arith.constant dense<0.000000e+00> : vector<8x128xf32>
    %38 = tpu.matmul %37, %19, %cst_35 {dimension_numbers = #tpu.dot_dimension_numbers<[1], [0], [0], [1], [0, 0, 1, 1], [], []>} : vector<8x128xf32>, vector<128x128xf32>, vector<8x128xf32> -> vector<8x128xf32>
    %39 = vector.broadcast %20 : vector<1x128xf32> to vector<8x128xf32>
    %40 = arith.addf %38, %39 : vector<8x128xf32>
    %cst_36 = arith.constant 0.000000e+00 : f32
    %41 = vector.broadcast %cst_36 : f32 to vector<8x128xf32>
    %42 = arith.cmpf oge, %40, %41 : vector<8x128xf32>
    %cst_37 = arith.constant 2.000000e-01 : f32
    %43 = vector.broadcast %cst_37 : f32 to vector<8x128xf32>
    %44 = arith.mulf %43, %40 : vector<8x128xf32>
    %45 = arith.select %42, %40, %44 : vector<8x128xi1>, vector<8x128xf32>
    %46 = arith.addf %22, %45 : vector<8x128xf32>
    %c0_38 = arith.constant 0 : index
    %c0_39 = arith.constant 0 : index
    %47 = vector.load %arg13[%c0_38, %c0_39] : memref<128x128xf32, #tpu.memory_space<vmem>>, vector<128x128xf32>
    %c0_40 = arith.constant 0 : index
    %c0_41 = arith.constant 0 : index
    %48 = vector.load %arg14[%c0_40, %c0_41] : memref<1x128xf32, #tpu.memory_space<vmem>>, vector<1x128xf32>
    %cst_42 = arith.constant dense<0.000000e+00> : vector<8x128xf32>
    %49 = tpu.matmul %46, %47, %cst_42 {dimension_numbers = #tpu.dot_dimension_numbers<[1], [0], [0], [1], [0, 0, 1, 1], [], []>} : vector<8x128xf32>, vector<128x128xf32>, vector<8x128xf32> -> vector<8x128xf32>
    %50 = vector.broadcast %48 : vector<1x128xf32> to vector<8x128xf32>
    %51 = arith.addf %49, %50 : vector<8x128xf32>
    %c0_43 = arith.constant 0 : index
    %c0_44 = arith.constant 0 : index
    %c0_45 = arith.constant 0 : index
    %52 = vector.load %arg15[%c0_43, %c0_44, %c0_45] : memref<1x8x128xf32, #tpu.memory_space<vmem>>, vector<1x8x128xf32>
    %53 = vector.shape_cast %52 : vector<1x8x128xf32> to vector<8x128xf32>
    %54 = vector.shape_cast %51 : vector<8x128xf32> to vector<1x8x128xf32>
    tpu.vector_store %arg15[%c0_43, %c0_44, %c0_45], %54 {strides = array<i32>} : memref<1x8x128xf32, #tpu.memory_space<vmem>>, vector<1x8x128xf32>,
    return
  }
  func.func @transform_0(%arg0: i32) -> (i32, i32, i32) {
    %c0_i32 = arith.constant 0 : i32
    %c0_i32_0 = arith.constant 0 : i32
    %c0_i32_1 = arith.constant 0 : i32
    return %arg0, %c0_i32, %c0_i32_0 : i32, i32, i32
  }
  func.func @transform_1(%arg0: i32) -> (i32, i32) {
    %c0_i32 = arith.constant 0 : i32
    %c0_i32_0 = arith.constant 0 : i32
    %c0_i32_1 = arith.constant 0 : i32
    return %c0_i32, %c0_i32_0 : i32, i32
  }
  func.func @transform_2(%arg0: i32) -> (i32, i32) {
    %c0_i32 = arith.constant 0 : i32
    %c0_i32_0 = arith.constant 0 : i32
    %c0_i32_1 = arith.constant 0 : i32
    return %c0_i32, %c0_i32_0 : i32, i32
  }
  func.func @transform_3(%arg0: i32) -> (i32, i32) {
    %c0_i32 = arith.constant 0 : i32
    %c0_i32_0 = arith.constant 0 : i32
    %c0_i32_1 = arith.constant 0 : i32
    return %c0_i32, %c0_i32_0 : i32, i32
  }
  func.func @transform_4(%arg0: i32) -> (i32, i32) {
    %c0_i32 = arith.constant 0 : i32
    %c0_i32_0 = arith.constant 0 : i32
    %c0_i32_1 = arith.constant 0 : i32
    return %c0_i32, %c0_i32_0 : i32, i32
  }
  func.func @transform_5(%arg0: i32) -> (i32, i32) {
    %c0_i32 = arith.constant 0 : i32
    %c0_i32_0 = arith.constant 0 : i32
    %c0_i32_1 = arith.constant 0 : i32
    return %c0_i32, %c0_i32_0 : i32, i32
  }
  func.func @transform_6(%arg0: i32) -> (i32, i32) {
    %c0_i32 = arith.constant 0 : i32
    %c0_i32_0 = arith.constant 0 : i32
    %c0_i32_1 = arith.constant 0 : i32
    return %c0_i32, %c0_i32_0 : i32, i32
  }
  func.func @transform_7(%arg0: i32) -> (i32, i32) {
    %c0_i32 = arith.constant 0 : i32
    %c0_i32_0 = arith.constant 0 : i32
    %c0_i32_1 = arith.constant 0 : i32
    return %c0_i32, %c0_i32_0 : i32, i32
  }
  func.func @transform_8(%arg0: i32) -> (i32, i32) {
    %c0_i32 = arith.constant 0 : i32
    %c0_i32_0 = arith.constant 0 : i32
    %c0_i32_1 = arith.constant 0 : i32
    return %c0_i32, %c0_i32_0 : i32, i32
  }
  func.func @transform_9(%arg0: i32) -> (i32, i32) {
    %c0_i32 = arith.constant 0 : i32
    %c0_i32_0 = arith.constant 0 : i32
    %c0_i32_1 = arith.constant 0 : i32
    return %c0_i32, %c0_i32_0 : i32, i32
  }
  func.func @transform_10(%arg0: i32) -> (i32, i32) {
    %c0_i32 = arith.constant 0 : i32
    %c0_i32_0 = arith.constant 0 : i32
    %c0_i32_1 = arith.constant 0 : i32
    return %c0_i32, %c0_i32_0 : i32, i32
  }
  func.func @transform_11(%arg0: i32) -> (i32, i32) {
    %c0_i32 = arith.constant 0 : i32
    %c0_i32_0 = arith.constant 0 : i32
    %c0_i32_1 = arith.constant 0 : i32
    return %c0_i32, %c0_i32_0 : i32, i32
  }
  func.func @transform_12(%arg0: i32) -> (i32, i32) {
    %c0_i32 = arith.constant 0 : i32
    %c0_i32_0 = arith.constant 0 : i32
    %c0_i32_1 = arith.constant 0 : i32
    return %c0_i32, %c0_i32_0 : i32, i32
  }
  func.func @transform_13(%arg0: i32) -> (i32, i32) {
    %c0_i32 = arith.constant 0 : i32
    %c0_i32_0 = arith.constant 0 : i32
    %c0_i32_1 = arith.constant 0 : i32
    return %c0_i32, %c0_i32_0 : i32, i32
  }
  func.func @transform_14(%arg0: i32) -> (i32, i32, i32) {
    %c0_i32 = arith.constant 0 : i32
    %c0_i32_0 = arith.constant 0 : i32
    %c0_i32_1 = arith.constant 0 : i32
    return %arg0, %c0_i32, %c0_i32_0 : i32, i32, i32
  }
}

</mosaic_0001>

<llo_original>
// kernel: forward.1
$region0: #{forward.1}
  #allocation0 [shape = 'u32[]', space=smem, size = 0x4, offset = 0x4, fixed_abs, tag = 'smem constant byte address 0x4 - core index']
  #allocation1 [shape = 'u32[144,128]{1,0:T(1,128)}', space=vmem, size = 0x12000, scoped, tag = 'internal scratch']
  %s0 = inlined_call_operand.vmem [shape: f32[2,16,128], index: 0, kind: input, shape index: {}]
  %s1 = inlined_call_operand.hbm [shape: f32[128,128], index: 1, kind: input, shape index: {}]
  %s2 = inlined_call_operand.vmem [shape: f32[1,128], index: 2, kind: input, shape index: {}]
  %s3 = inlined_call_operand.vmem [shape: f32[8,16], index: 3, kind: input, shape index: {}]
  %s4 = inlined_call_operand.vmem [shape: f32[8,16], index: 4, kind: input, shape index: {}]
  %s5 = inlined_call_operand.vmem [shape: f32[8,16], index: 5, kind: input, shape index: {}]
  %s6 = inlined_call_operand.hbm [shape: f32[128,128], index: 6, kind: input, shape index: {}]
  %s7 = inlined_call_operand.hbm [shape: f32[128,128], index: 7, kind: input, shape index: {}]
  %s8 = inlined_call_operand.vmem [shape: f32[128,128], index: 8, kind: input, shape index: {}]
  %s9 = inlined_call_operand.vmem [shape: f32[1,128], index: 9, kind: input, shape index: {}]
  %s10 = inlined_call_operand.vmem [shape: f32[128,128], index: 10, kind: input, shape index: {}]
  %s11 = inlined_call_operand.vmem [shape: f32[1,128], index: 11, kind: input, shape index: {}]
  %s12 = inlined_call_operand.vmem [shape: f32[128,128], index: 12, kind: input, shape index: {}]
  %s13 = inlined_call_operand.vmem [shape: f32[1,128], index: 13, kind: input, shape index: {}]
  %s14 = inlined_call_operand.vmem [shape: f32[2,8,128], index: 14, kind: output, shape index: {}]
  %s15 = sld [smem:[#allocation0]]
  $region101: #{forward.1} parent=0
    _
  %s17 = ssub.s32 1, %s15
  %s18 = scalar_select 0, %s17, %s15
  $region1: #{forward.1} parent=0
    #allocation2 [shape = 'u8[65536]{0}', space=vmem, size = 0x10000, scoped, tag = 'input window, operand 1, single buffered']
    #allocation3 [shape = 's32[2]{0}', space=sflag, size = 0x8, scoped, tag = 'scoped memory for forward.1']
    #allocation4 [shape = 'u8[65536]{0}', space=vmem, size = 0x10000, scoped, tag = 'input window, operand 6, single buffered']
    #allocation5 [shape = 's32[1]{0}', space=sflag, size = 0x4, scoped, tag = 'scoped memory for forward.1']
    #allocation6 [shape = 'u8[65536]{0}', space=vmem, size = 0x10000, scoped, tag = 'input window, operand 7, single buffered']
    %19 = vsyncpa [#allocation3], 0
    %20 = vsyncpa [#allocation5], 0
    loop: start=0, step=1, limit=4
    $region2: #{forward.1} parent=1 // loop_pre_header
      _
    $region3: #{forward.1} parent=1 // loop_header
      %s22 = sphi 0, %s26
      %p23 = scmp.ge.s32.totalorder %s22, 4
      %s32 = sphi 0, %s34
      %s35 = sphi 0, %s32
      %s36 = sphi 0, %s35
      %s52 = sphi 0, %s36
      %s56 = sphi 0, %s56
      %s58 = sphi 0, %s56
      %s59 = sphi 0, %s58
      %s73 = sphi 0, %s59
      %s77 = sphi 0, %s77
      %s79 = sphi 0, %s77
      %s80 = sphi 0, %s79
      %s94 = sphi 0, %s80
      %s98 = sphi 0, %s98
      %s100 = sphi 0, %s98
      %s101 = sphi 0, %s100
      %s115 = sphi 0, %s101
      %s119 = sphi 0, %s119
      %s121 = sphi 0, %s119
      %s122 = sphi 0, %s121
      %s136 = sphi 0, %s122
      %s140 = sphi 0, %s140
      %s142 = sphi 0, %s140
      %s143 = sphi 0, %s142
      %s157 = sphi 0, %s143
      %s161 = sphi 0, %s161
      %s163 = sphi 0, %s161
      %s164 = sphi 0, %s163
      %s178 = sphi 0, %s164
      %s182 = sphi 0, %s182
      %s184 = sphi 0, %s182
      %s185 = sphi 0, %s184
      %s199 = sphi 0, %s185
      %s203 = sphi 0, %s203
      %s205 = sphi 0, %s203
      %s206 = sphi 0, %s205
      %s220 = sphi 0, %s206
      %s224 = sphi 0, %s224
      %s226 = sphi 0, %s224
      %s227 = sphi 0, %s226
      %s241 = sphi 0, %s227
      %s245 = sphi 0, %s245
      %s247 = sphi 0, %s245
      %s248 = sphi 0, %s247
      %s262 = sphi 0, %s248
      %s266 = sphi 0, %s266
      %s268 = sphi 0, %s266
      %s269 = sphi 0, %s268
      %s283 = sphi 0, %s269
      %s287 = sphi 0, %s287
      %s289 = sphi 0, %s287
      %s290 = sphi 0, %s289
      %s304 = sphi 0, %s290
      %s308 = sphi 0, %s308
      %s310 = sphi 0, %s308
      %s311 = sphi 0, %s310
      %s325 = sphi 0, %s311
      %s331 = sphi 0, %s333
      %s334 = sphi 0, %s331
      %s335 = sphi 0, %s334
      %s351 = sphi 0, %s335
    $region4: #{forward.1} parent=1 // loop_header_branch
      %25 = sbr.rel (%p23) target = $region8
    $region5: #{forward.1} parent=1 // loop_body
      %s27 = ssub.s32 %s22, 1
      %s28 = ssub.s32 %s22, 2
      %s29 = sadd.s32 %s22, 1
      %s30 = ssub.s32 %s22, %s29
      %p31 = scmp.eq.s32.totalorder %s30, 0
      %s33 = sadd.s32 %s32, 1
      %s34 = scalar_select %p31, %s32, %s33
      %p37 = pneg %p31
      %p38 = scmp.eq.s32.totalorder %s22, 1
      %p39 = por %p37, %p38
      %p40 = scmp.ne.s32.totalorder %s32, %s35
      %p41 = scmp.eq.s32.totalorder %s22, 0
      %p42 = por %p40, %p41
      %p43 = scmp.ne.s32.totalorder %s32, %s35
      %p44 = scmp.eq.s32.totalorder %s27, 1
      %p45 = por %p43, %p44
      %p46 = scmp.ne.s32.totalorder %s35, %s36
      %p47 = scmp.eq.s32.totalorder %s27, 0
      %p48 = por %p46, %p47
      %p49 = scmp.ne.s32.totalorder %s35, %s36
      %p50 = scmp.eq.s32.totalorder %s28, 1
      %p51 = por %p49, %p50
      %p53 = scmp.ne.s32.totalorder %s36, %s52
      %p54 = scmp.eq.s32.totalorder %s28, 0
      %p55 = por %p53, %p54
      %s57 = sadd.s32 %s56, 1
      %p60 = scmp.eq.s32.totalorder %s22, 1
      %p61 = scmp.ne.s32.totalorder %s56, %s58
      %p62 = scmp.eq.s32.totalorder %s22, 0
      %p63 = por %p61, %p62
      %p64 = scmp.ne.s32.totalorder %s56, %s58
      %p65 = scmp.eq.s32.totalorder %s27, 1
      %p66 = por %p64, %p65
      %p67 = scmp.ne.s32.totalorder %s58, %s59
      %p68 = scmp.eq.s32.totalorder %s27, 0
      %p69 = por %p67, %p68
      %p70 = scmp.ne.s32.totalorder %s58, %s59
      %p71 = scmp.eq.s32.totalorder %s28, 1
      %p72 = por %p70, %p71
      %p74 = scmp.ne.s32.totalorder %s59, %s73
      %p75 = scmp.eq.s32.totalorder %s28, 0
      %p76 = por %p74, %p75
      %s78 = sadd.s32 %s77, 1
      %p81 = scmp.eq.s32.totalorder %s22, 1
      %p82 = scmp.ne.s32.totalorder %s77, %s79
      %p83 = scmp.eq.s32.totalorder %s22, 0
      %p84 = por %p82, %p83
      %p85 = scmp.ne.s32.totalorder %s77, %s79
      %p86 = scmp.eq.s32.totalorder %s27, 1
      %p87 = por %p85, %p86
      %p88 = scmp.ne.s32.totalorder %s79, %s80
      %p89 = scmp.eq.s32.totalorder %s27, 0
      %p90 = por %p88, %p89
      %p91 = scmp.ne.s32.totalorder %s79, %s80
      %p92 = scmp.eq.s32.totalorder %s28, 1
      %p93 = por %p91, %p92
      %p95 = scmp.ne.s32.totalorder %s80, %s94
      %p96 = scmp.eq.s32.totalorder %s28, 0
      %p97 = por %p95, %p96
      %s99 = sadd.s32 %s98, 1
      %p102 = scmp.eq.s32.totalorder %s22, 1
      %p103 = scmp.ne.s32.totalorder %s98, %s100
      %p104 = scmp.eq.s32.totalorder %s22, 0
      %p105 = por %p103, %p104
      %p106 = scmp.ne.s32.totalorder %s98, %s100
      %p107 = scmp.eq.s32.totalorder %s27, 1
      %p108 = por %p106, %p107
      %p109 = scmp.ne.s32.totalorder %s100, %s101
      %p110 = scmp.eq.s32.totalorder %s27, 0
      %p111 = por %p109, %p110
      %p112 = scmp.ne.s32.totalorder %s100, %s101
      %p113 = scmp.eq.s32.totalorder %s28, 1
      %p114 = por %p112, %p113
      %p116 = scmp.ne.s32.totalorder %s101, %s115
      %p117 = scmp.eq.s32.totalorder %s28, 0
      %p118 = por %p116, %p117
      %s120 = sadd.s32 %s119, 1
      %p123 = scmp.eq.s32.totalorder %s22, 1
      %p124 = scmp.ne.s32.totalorder %s119, %s121
      %p125 = scmp.eq.s32.totalorder %s22, 0
      %p126 = por %p124, %p125
      %p127 = scmp.ne.s32.totalorder %s119, %s121
      %p128 = scmp.eq.s32.totalorder %s27, 1
      %p129 = por %p127, %p128
      %p130 = scmp.ne.s32.totalorder %s121, %s122
      %p131 = scmp.eq.s32.totalorder %s27, 0
      %p132 = por %p130, %p131
      %p133 = scmp.ne.s32.totalorder %s121, %s122
      %p134 = scmp.eq.s32.totalorder %s28, 1
      %p135 = por %p133, %p134
      %p137 = scmp.ne.s32.totalorder %s122, %s136
      %p138 = scmp.eq.s32.totalorder %s28, 0
      %p139 = por %p137, %p138
      %s141 = sadd.s32 %s140, 1
      %p144 = scmp.eq.s32.totalorder %s22, 1
      %p145 = scmp.ne.s32.totalorder %s140, %s142
      %p146 = scmp.eq.s32.totalorder %s22, 0
      %p147 = por %p145, %p146
      %p148 = scmp.ne.s32.totalorder %s140, %s142
      %p149 = scmp.eq.s32.totalorder %s27, 1
      %p150 = por %p148, %p149
      %p151 = scmp.ne.s32.totalorder %s142, %s143
      %p152 = scmp.eq.s32.totalorder %s27, 0
      %p153 = por %p151, %p152
      %p154 = scmp.ne.s32.totalorder %s142, %s143
      %p155 = scmp.eq.s32.totalorder %s28, 1
      %p156 = por %p154, %p155
      %p158 = scmp.ne.s32.totalorder %s143, %s157
      %p159 = scmp.eq.s32.totalorder %s28, 0
      %p160 = por %p158, %p159
      %s162 = sadd.s32 %s161, 1
      %p165 = scmp.eq.s32.totalorder %s22, 1
      %p166 = scmp.ne.s32.totalorder %s161, %s163
      %p167 = scmp.eq.s32.totalorder %s22, 0
      %p168 = por %p166, %p167
      %p169 = scmp.ne.s32.totalorder %s161, %s163
      %p170 = scmp.eq.s32.totalorder %s27, 1
      %p171 = por %p169, %p170
      %p172 = scmp.ne.s32.totalorder %s163, %s164
      %p173 = scmp.eq.s32.totalorder %s27, 0
      %p174 = por %p172, %p173
      %p175 = scmp.ne.s32.totalorder %s163, %s164
      %p176 = scmp.eq.s32.totalorder %s28, 1
      %p177 = por %p175, %p176
      %p179 = scmp.ne.s32.totalorder %s164, %s178
      %p180 = scmp.eq.s32.totalorder %s28, 0
      %p181 = por %p179, %p180
      %s183 = sadd.s32 %s182, 1
      %p186 = scmp.eq.s32.totalorder %s22, 1
      %p187 = scmp.ne.s32.totalorder %s182, %s184
      %p188 = scmp.eq.s32.totalorder %s22, 0
      %p189 = por %p187, %p188
      %p190 = scmp.ne.s32.totalorder %s182, %s184
      %p191 = scmp.eq.s32.totalorder %s27, 1
      %p192 = por %p190, %p191
      %p193 = scmp.ne.s32.totalorder %s184, %s185
      %p194 = scmp.eq.s32.totalorder %s27, 0
      %p195 = por %p193, %p194
      %p196 = scmp.ne.s32.totalorder %s184, %s185
      %p197 = scmp.eq.s32.totalorder %s28, 1
      %p198 = por %p196, %p197
      %p200 = scmp.ne.s32.totalorder %s185, %s199
      %p201 = scmp.eq.s32.totalorder %s28, 0
      %p202 = por %p200, %p201
      %s204 = sadd.s32 %s203, 1
      %p207 = scmp.eq.s32.totalorder %s22, 1
      %p208 = scmp.ne.s32.totalorder %s203, %s205
      %p209 = scmp.eq.s32.totalorder %s22, 0
      %p210 = por %p208, %p209
      %p211 = scmp.ne.s32.totalorder %s203, %s205
      %p212 = scmp.eq.s32.totalorder %s27, 1
      %p213 = por %p211, %p212
      %p214 = scmp.ne.s32.totalorder %s205, %s206
      %p215 = scmp.eq.s32.totalorder %s27, 0
      %p216 = por %p214, %p215
      %p217 = scmp.ne.s32.totalorder %s205, %s206
      %p218 = scmp.eq.s32.totalorder %s28, 1
      %p219 = por %p217, %p218
      %p221 = scmp.ne.s32.totalorder %s206, %s220
      %p222 = scmp.eq.s32.totalorder %s28, 0
      %p223 = por %p221, %p222
      %s225 = sadd.s32 %s224, 1
      %p228 = scmp.eq.s32.totalorder %s22, 1
      %p229 = scmp.ne.s32.totalorder %s224, %s226
      %p230 = scmp.eq.s32.totalorder %s22, 0
      %p231 = por %p229, %p230
      %p232 = scmp.ne.s32.totalorder %s224, %s226
      %p233 = scmp.eq.s32.totalorder %s27, 1
      %p234 = por %p232, %p233
      %p235 = scmp.ne.s32.totalorder %s226, %s227
      %p236 = scmp.eq.s32.totalorder %s27, 0
      %p237 = por %p235, %p236
      %p238 = scmp.ne.s32.totalorder %s226, %s227
      %p239 = scmp.eq.s32.totalorder %s28, 1
      %p240 = por %p238, %p239
      %p242 = scmp.ne.s32.totalorder %s227, %s241
      %p243 = scmp.eq.s32.totalorder %s28, 0
      %p244 = por %p242, %p243
      %s246 = sadd.s32 %s245, 1
      %p249 = scmp.eq.s32.totalorder %s22, 1
      %p250 = scmp.ne.s32.totalorder %s245, %s247
      %p251 = scmp.eq.s32.totalorder %s22, 0
      %p252 = por %p250, %p251
      %p253 = scmp.ne.s32.totalorder %s245, %s247
      %p254 = scmp.eq.s32.totalorder %s27, 1
      %p255 = por %p253, %p254
      %p256 = scmp.ne.s32.totalorder %s247, %s248
      %p257 = scmp.eq.s32.totalorder %s27, 0
      %p258 = por %p256, %p257
      %p259 = scmp.ne.s32.totalorder %s247, %s248
      %p260 = scmp.eq.s32.totalorder %s28, 1
      %p261 = por %p259, %p260
      %p263 = scmp.ne.s32.totalorder %s248, %s262
      %p264 = scmp.eq.s32.totalorder %s28, 0
      %p265 = por %p263, %p264
      %s267 = sadd.s32 %s266, 1
      %p270 = scmp.eq.s32.totalorder %s22, 1
      %p271 = scmp.ne.s32.totalorder %s266, %s268
      %p272 = scmp.eq.s32.totalorder %s22, 0
      %p273 = por %p271, %p272
      %p274 = scmp.ne.s32.totalorder %s266, %s268
      %p275 = scmp.eq.s32.totalorder %s27, 1
      %p276 = por %p274, %p275
      %p277 = scmp.ne.s32.totalorder %s268, %s269
      %p278 = scmp.eq.s32.totalorder %s27, 0
      %p279 = por %p277, %p278
      %p280 = scmp.ne.s32.totalorder %s268, %s269
      %p281 = scmp.eq.s32.totalorder %s28, 1
      %p282 = por %p280, %p281
      %p284 = scmp.ne.s32.totalorder %s269, %s283
      %p285 = scmp.eq.s32.totalorder %s28, 0
      %p286 = por %p284, %p285
      %s288 = sadd.s32 %s287, 1
      %p291 = scmp.eq.s32.totalorder %s22, 1
      %p292 = scmp.ne.s32.totalorder %s287, %s289
      %p293 = scmp.eq.s32.totalorder %s22, 0
      %p294 = por %p292, %p293
      %p295 = scmp.ne.s32.totalorder %s287, %s289
      %p296 = scmp.eq.s32.totalorder %s27, 1
      %p297 = por %p295, %p296
      %p298 = scmp.ne.s32.totalorder %s289, %s290
      %p299 = scmp.eq.s32.totalorder %s27, 0
      %p300 = por %p298, %p299
      %p301 = scmp.ne.s32.totalorder %s289, %s290
      %p302 = scmp.eq.s32.totalorder %s28, 1
      %p303 = por %p301, %p302
      %p305 = scmp.ne.s32.totalorder %s290, %s304
      %p306 = scmp.eq.s32.totalorder %s28, 0
      %p307 = por %p305, %p306
      %s309 = sadd.s32 %s308, 1
      %p312 = scmp.eq.s32.totalorder %s22, 1
      %p313 = scmp.ne.s32.totalorder %s308, %s310
      %p314 = scmp.eq.s32.totalorder %s22, 0
      %p315 = por %p313, %p314
      %p316 = scmp.ne.s32.totalorder %s308, %s310
      %p317 = scmp.eq.s32.totalorder %s27, 1
      %p318 = por %p316, %p317
      %p319 = scmp.ne.s32.totalorder %s310, %s311
      %p320 = scmp.eq.s32.totalorder %s27, 0
      %p321 = por %p319, %p320
      %p322 = scmp.ne.s32.totalorder %s310, %s311
      %p323 = scmp.eq.s32.totalorder %s28, 1
      %p324 = por %p322, %p323
      %p326 = scmp.ne.s32.totalorder %s311, %s325
      %p327 = scmp.eq.s32.totalorder %s28, 0
      %p328 = por %p326, %p327
      %s329 = ssub.s32 %s22, %s29
      %p330 = scmp.eq.s32.totalorder %s329, 0
      %s332 = sadd.s32 %s331, 1
      %s333 = scalar_select %p330, %s331, %s332
      %p336 = pneg %p330
      %p337 = scmp.eq.s32.totalorder %s22, 1
      %p338 = por %p336, %p337
      %p339 = scmp.ne.s32.totalorder %s331, %s334
      %p340 = scmp.eq.s32.totalorder %s22, 0
      %p341 = por %p339, %p340
      %p342 = scmp.ne.s32.totalorder %s331, %s334
      %p343 = scmp.eq.s32.totalorder %s27, 1
      %p344 = por %p342, %p343
      %p345 = scmp.ne.s32.totalorder %s334, %s335
      %p346 = scmp.eq.s32.totalorder %s27, 0
      %p347 = por %p345, %p346
      %p348 = scmp.ne.s32.totalorder %s334, %s335
      %p349 = scmp.eq.s32.totalorder %s28, 1
      %p350 = por %p348, %p349
      %p352 = scmp.ne.s32.totalorder %s335, %s351
      %p353 = scmp.eq.s32.totalorder %s28, 0
      %p354 = por %p352, %p353
      %p355 = scmp.le.s32.totalorder 1, %s22
      %p356 = scmp.lt.s32.totalorder %s22, 3
      %p357 = pnand %p355, %p356
      %p358 = pneg %p357
      // Predicated region
      $region9: #{forward.1} parent=5 // pred_check
        _
      $region10: #{forward.1} parent=5 // pred_check_branch
        %360 = sbr.rel (%p357) target = $region12
      $region11: #{forward.1} parent=5 // pred_region
        %s361 = ssub.s32 %s22, 1
        // Predicated region
        $region13: #{forward.1} parent=11 // pred_check
          %p362 = pneg %p69
        $region14: #{forward.1} parent=11 // pred_check_branch
          %364 = sbr.rel (%p362) target = $region16
        $region15: #{forward.1} parent=11 // pred_region
          %s366 = ssub.s32 2048, 2048
          %367 = vsyncadd [#allocation3], %s366
          %s368 = sshll.u32 [#allocation2], 4
          %s369 = int_to_ptr.vmem [resolvable:$true] %s368
          %374 = dma.hbm_to_vmem [thread:$0]  %s1, 2048, %s369, [#allocation3], 128, 128, 8
        $region16: #{forward.1} parent=11 // pred_fallthru
          _
        // Predicated region
        $region17: #{forward.1} parent=11 // pred_check
          %p375 = pneg %p90
        $region18: #{forward.1} parent=11 // pred_check_branch
          %377 = sbr.rel (%p375) target = $region20
        $region19: #{forward.1} parent=11 // pred_region
          _
        $region20: #{forward.1} parent=11 // pred_fallthru
          _
        // Predicated region
        $region21: #{forward.1} parent=11 // pred_check
          %p378 = pneg %p111
        $region22: #{forward.1} parent=11 // pred_check_branch
          %380 = sbr.rel (%p378) target = $region24
        $region23: #{forward.1} parent=11 // pred_region
          _
        $region24: #{forward.1} parent=11 // pred_fallthru
          _
        // Predicated region
        $region25: #{forward.1} parent=11 // pred_check
          %p381 = pneg %p132
        $region26: #{forward.1} parent=11 // pred_check_branch
          %383 = sbr.rel (%p381) target = $region28
        $region27: #{forward.1} parent=11 // pred_region
          _
        $region28: #{forward.1} parent=11 // pred_fallthru
          _
        // Predicated region
        $region29: #{forward.1} parent=11 // pred_check
          %p384 = pneg %p153
        $region30: #{forward.1} parent=11 // pred_check_branch
          %386 = sbr.rel (%p384) target = $region32
        $region31: #{forward.1} parent=11 // pred_region
          _
        $region32: #{forward.1} parent=11 // pred_fallthru
          _
        // Predicated region
        $region33: #{forward.1} parent=11 // pred_check
          %p387 = pneg %p174
        $region34: #{forward.1} parent=11 // pred_check_branch
          %389 = sbr.rel (%p387) target = $region36
        $region35: #{forward.1} parent=11 // pred_region
          %s391 = ssub.s32 2048, 2048
          %392 = vsyncadd [#allocation5], %s391
          %s393 = sshll.u32 [#allocation4], 4
          %s394 = int_to_ptr.vmem [resolvable:$true] %s393
          %399 = dma.hbm_to_vmem [thread:$0]  %s6, 2048, %s394, [#allocation5], 128, 128, 8
        $region36: #{forward.1} parent=11 // pred_fallthru
          _
        // Predicated region
        $region37: #{forward.1} parent=11 // pred_check
          %p400 = pneg %p195
        $region38: #{forward.1} parent=11 // pred_check_branch
          %402 = sbr.rel (%p400) target = $region40
        $region39: #{forward.1} parent=11 // pred_region
          %s404 = ssub.s32 2048, 2048
          %405 = vsyncadd [#allocation5], %s404
          %s406 = sshll.u32 [#allocation6], 4
          %s407 = int_to_ptr.vmem [resolvable:$true] %s406
          %412 = dma.hbm_to_vmem [thread:$0]  %s7, 2048, %s407, [#allocation5], 128, 128, 8
        $region40: #{forward.1} parent=11 // pred_fallthru
          _
        // Predicated region
        $region41: #{forward.1} parent=11 // pred_check
          %p413 = pneg %p216
        $region42: #{forward.1} parent=11 // pred_check_branch
          %415 = sbr.rel (%p413) target = $region44
        $region43: #{forward.1} parent=11 // pred_region
          _
        $region44: #{forward.1} parent=11 // pred_fallthru
          _
        // Predicated region
        $region45: #{forward.1} parent=11 // pred_check
          %p416 = pneg %p237
        $region46: #{forward.1} parent=11 // pred_check_branch
          %418 = sbr.rel (%p416) target = $region48
        $region47: #{forward.1} parent=11 // pred_region
          _
        $region48: #{forward.1} parent=11 // pred_fallthru
          _
        // Predicated region
        $region49: #{forward.1} parent=11 // pred_check
          %p419 = pneg %p258
        $region50: #{forward.1} parent=11 // pred_check_branch
          %421 = sbr.rel (%p419) target = $region52
        $region51: #{forward.1} parent=11 // pred_region
          _
        $region52: #{forward.1} parent=11 // pred_fallthru
          _
        // Predicated region
        $region53: #{forward.1} parent=11 // pred_check
          %p422 = pneg %p279
        $region54: #{forward.1} parent=11 // pred_check_branch
          %424 = sbr.rel (%p422) target = $region56
        $region55: #{forward.1} parent=11 // pred_region
          _
        $region56: #{forward.1} parent=11 // pred_fallthru
          _
        // Predicated region
        $region57: #{forward.1} parent=11 // pred_check
          %p425 = pneg %p300
        $region58: #{forward.1} parent=11 // pred_check_branch
          %427 = sbr.rel (%p425) target = $region60
        $region59: #{forward.1} parent=11 // pred_region
          _
        $region60: #{forward.1} parent=11 // pred_fallthru
          _
        // Predicated region
        $region61: #{forward.1} parent=11 // pred_check
          %p428 = pneg %p321
        $region62: #{forward.1} parent=11 // pred_check_branch
          %430 = sbr.rel (%p428) target = $region64
        $region63: #{forward.1} parent=11 // pred_region
          _
        $region64: #{forward.1} parent=11 // pred_fallthru
          _
      $region12: #{forward.1} parent=5 // pred_fallthru
        _
      %p431 = scmp.lt.s32.totalorder %s22, 2
      // Predicated region
      $region65: #{forward.1} parent=5 // pred_check
        %p432 = pneg %p431
      $region66: #{forward.1} parent=5 // pred_check_branch
        %434 = sbr.rel (%p432) target = $region68
      $region67: #{forward.1} parent=5 // pred_region
        // Predicated region
        $region69: #{forward.1} parent=67 // pred_check
          %p435 = pneg %p42
        $region70: #{forward.1} parent=67 // pred_check_branch
          %437 = sbr.rel (%p435) target = $region72
        $region71: #{forward.1} parent=67 // pred_region
          %p438 = scmp.lt.s32.totalorder %s22, 1
          %s439 = scalar_select %p438, %s22, 1
          %s440 = smul.addr %s439, 2
          %s441 = smul.addr %s440, 8
          %s442 = scalar_lea.vmem %s0, %s441
        $region72: #{forward.1} parent=67 // pred_fallthru
          _
      $region68: #{forward.1} parent=5 // pred_fallthru
        _
      %p443 = scmp.le.s32.totalorder 1, %s22
      %p444 = scmp.lt.s32.totalorder %s22, 3
      %p445 = pnand %p443, %p444
      %p446 = pneg %p445
      // Predicated region
      $region73: #{forward.1} parent=5 // pred_check
        _
      $region74: #{forward.1} parent=5 // pred_check_branch
        %448 = sbr.rel (%p445) target = $region76
      $region75: #{forward.1} parent=5 // pred_region
        %s449 = ssub.s32 %s22, 1
        // Predicated region
        $region77: #{forward.1} parent=75 // pred_check
          %p450 = pneg %p69
        $region78: #{forward.1} parent=75 // pred_check_branch
          %452 = sbr.rel (%p450) target = $region80
        $region79: #{forward.1} parent=75 // pred_region
          %453 = dma.done [#allocation3], 2048
        $region80: #{forward.1} parent=75 // pred_fallthru
          _
        // Predicated region
        $region81: #{forward.1} parent=75 // pred_check
          %p454 = pneg %p174
        $region82: #{forward.1} parent=75 // pred_check_branch
          %456 = sbr.rel (%p454) target = $region84
        $region83: #{forward.1} parent=75 // pred_region
          %457 = dma.done [#allocation5], 2048
        $region84: #{forward.1} parent=75 // pred_fallthru
          _
        // Predicated region
        $region85: #{forward.1} parent=75 // pred_check
          %p458 = pneg %p195
        $region86: #{forward.1} parent=75 // pred_check_branch
          %460 = sbr.rel (%p458) target = $region88
        $region87: #{forward.1} parent=75 // pred_region
          %461 = dma.done [#allocation5], 2048
        $region88: #{forward.1} parent=75 // pred_fallthru
          _
        %p462 = scmp.lt.s32.totalorder %s27, 1
        %s463 = scalar_select %p462, %s27, 1
        %s464 = smul.addr %s463, 2
        %s465 = smul.addr %s464, 8
        %s466 = scalar_lea.vmem %s0, %s465
        %p467 = pneg %p48
        %p468 = pneg %p45
        %p469 = pneg %p69
        %p470 = pneg %p66
        %p471 = pneg %p90
        %p472 = pneg %p87
        %p473 = pneg %p111
        %p474 = pneg %p108
        %p475 = pneg %p132
        %p476 = pneg %p129
        %p477 = pneg %p153
        %p478 = pneg %p150
        %p479 = pneg %p174
        %p480 = pneg %p171
        %p481 = pneg %p195
        %p482 = pneg %p192
        %p483 = pneg %p216
        %p484 = pneg %p213
        %p485 = pneg %p237
        %p486 = pneg %p234
        %p487 = pneg %p258
        %p488 = pneg %p255
        %p489 = pneg %p279
        %p490 = pneg %p276
        %p491 = pneg %p300
        %p492 = pneg %p297
        %p493 = pneg %p321
        %p494 = pneg %p318
        %p495 = pneg %p347
        %p496 = pneg %p344
        %p497 = scmp.lt.s32.totalorder %s27, 1
        %s498 = scalar_select %p497, %s27, 1
        %s499 = smul.addr %s498, 8
        %s500 = scalar_lea.vmem %s14, %s499
        %p501 = scmp.lt.s32.totalorder %s27, 1
        %s502 = scalar_select %p501, %s27, 1
        %s503 = smul.addr %s502, 2
        %s504 = smul.addr %s503, 8
        %s505 = scalar_lea.vmem %s0, %s504
        %p506 = scmp.lt.s32.totalorder %s27, 1
        %s507 = scalar_select %p506, %s27, 1
        %s508 = smul.addr %s507, 8
        %s509 = scalar_lea.vmem %s14, %s508
        %v510 = vld [vmem:[%s505] sm:$0xff]
        %v511 = vld [vmem:[%s505 + $0x8] sm:$0xff]
        %v512 = vld [vmem:[#allocation2] sm:$0xff]
        %v513 = vld [vmem:[#allocation2 + $0x8] sm:$0xff]
        %v514 = vld [vmem:[#allocation2 + $0x10] sm:$0xff]
        %v515 = vld [vmem:[#allocation2 + $0x18] sm:$0xff]
        %v516 = vld [vmem:[#allocation2 + $0x20] sm:$0xff]
        %v517 = vld [vmem:[#allocation2 + $0x28] sm:$0xff]
        %v518 = vld [vmem:[#allocation2 + $0x30] sm:$0xff]
        %v519 = vld [vmem:[#allocation2 + $0x38] sm:$0xff]
        %v520 = vld [vmem:[#allocation2 + $0x40] sm:$0xff]
        %v521 = vld [vmem:[#allocation2 + $0x48] sm:$0xff]
        %v522 = vld [vmem:[#allocation2 + $0x50] sm:$0xff]
        %v523 = vld [vmem:[#allocation2 + $0x58] sm:$0xff]
        %v524 = vld [vmem:[#allocation2 + $0x60] sm:$0xff]
        %v525 = vld [vmem:[#allocation2 + $0x68] sm:$0xff]
        %v526 = vld [vmem:[#allocation2 + $0x70] sm:$0xff]
        %v527 = vld [vmem:[#allocation2 + $0x78] sm:$0xff]
        %v528 = vld [vmem:[%s2] sm:$0x1]
        %v530 = vlaneseq
        %v531 = vshrl.u32 %v530, 7
        %v532 = vsub.s32 0, %v531
        %v533 = vrot.slane %v528, %v532
        %535 = vmatprep.subr.mxu0 0.0
        %536 = vmatpush1.msra.mxu0 %v527
        %537 = vmatprep.subr.mxu0 0.0
        %538 = vmatpush1.msra.mxu0 %v526
        %539 = vmatprep.subr.mxu0 0.0
        %540 = vmatpush1.msra.mxu0 %v525
        %541 = vmatprep.subr.mxu0 0.0
        %542 = vmatpush1.msra.mxu0 %v524
        %543 = vmatprep.subr.mxu0 0.0
        %544 = vmatpush1.msra.mxu0 %v523
        %545 = vmatprep.subr.mxu0 0.0
        %546 = vmatpush1.msra.mxu0 %v522
        %547 = vmatprep.subr.mxu0 0.0
        %548 = vmatpush1.msra.mxu0 %v521
        %549 = vmatprep.subr.mxu0 0.0
        %550 = vmatpush1.msra.mxu0 %v520
        %551 = vmatprep.subr.mxu0 0.0
        %552 = vmatpush1.msra.mxu0 %v519
        %553 = vmatprep.subr.mxu0 0.0
        %554 = vmatpush1.msra.mxu0 %v518
        %555 = vmatprep.subr.mxu0 0.0
        %556 = vmatpush1.msra.mxu0 %v517
        %557 = vmatprep.subr.mxu0 0.0
        %558 = vmatpush1.msra.mxu0 %v516
        %559 = vmatprep.subr.mxu0 0.0
        %560 = vmatpush1.msra.mxu0 %v515
        %561 = vmatprep.subr.mxu0 0.0
        %562 = vmatpush1.msra.mxu0 %v514
        %563 = vmatprep.subr.mxu0 0.0
        %564 = vmatpush1.msra.mxu0 %v513
        %565 = vmatprep.subr.mxu0 0.0
        %566 = vmatpush1.msra.mxu0 %v512
        %567 = vmatprep.subr.mxu0 0.0
        %568 = vmatpush2.msra.mxu0 0.0
        %569 = vmatprep.subr.mxu0 0.0
        %570 = vmatpush2.msra.mxu0 0.0
        %571 = vmatprep.subr.mxu0 0.0
        %572 = vmatpush2.msra.mxu0 0.0
        %573 = vmatprep.subr.mxu0 0.0
        %574 = vmatpush2.msra.mxu0 0.0
        %575 = vmatprep.subr.mxu0 0.0
        %576 = vmatpush2.msra.mxu0 0.0
        %577 = vmatprep.subr.mxu0 0.0
        %578 = vmatpush2.msra.mxu0 0.0
        %579 = vmatprep.subr.mxu0 0.0
        %580 = vmatpush2.msra.mxu0 0.0
        %581 = vmatprep.subr.mxu0 0.0
        %582 = vmatpush2.msra.mxu0 0.0
        %583 = vmatprep.subr.mxu0 0.0
        %584 = vmatpush2.msra.mxu0 0.0
        %585 = vmatprep.subr.mxu0 0.0
        %586 = vmatpush2.msra.mxu0 0.0
        %587 = vmatprep.subr.mxu0 0.0
        %588 = vmatpush2.msra.mxu0 0.0
        %589 = vmatprep.subr.mxu0 0.0
        %590 = vmatpush2.msra.mxu0 0.0
        %591 = vmatprep.subr.mxu0 0.0
        %592 = vmatpush2.msra.mxu0 0.0
        %593 = vmatprep.subr.mxu0 0.0
        %594 = vmatpush2.msra.mxu0 0.0
        %595 = vmatprep.subr.mxu0 0.0
        %596 = vmatpush2.msra.mxu0 0.0
        %597 = vmatprep.subr.mxu0 0.0
        %598 = vmatpush2.msra.mxu0 0.0
        %599 = vmatprep.mubr.f32.mxu0 0.0
        %600 = vmatmul.mubr.f32.gmra.mxu0 %v510
        %v601 = vpop.f32.mrf.mxu0
        %v602 = vadd.f32 %v533, %v601
        %v603 = vpop.f32.mrf.mxu0
        %604 = vmatprep.mubr.f32.mxu0 0.0
        %605 = vmatmul.mubr.f32.gmra.mxu0 %v511
        %v606 = vpop.f32.mrf.mxu0
        %v607 = vadd.f32 %v533, %v606
        %v608 = vpop.f32.mrf.mxu0
        %609 = vdwg.mxu0
        %vm610 = vcmp.ge.f32.partialorder %v602, 0.0
        %vm611 = vcmp.ge.f32.partialorder %v607, 0.0
        %v612 = vmul.f32 %v602, 0.2
        %v613 = vmul.f32 %v607, 0.2
        %v614 = vsel %vm610, %v602, %v612
        %v615 = vsel %vm611, %v607, %v613
        %v616 = vld [vmem:[%s3] sm:$0xff]
        %v617 = vld [vmem:[%s4] sm:$0xff]
        %v618 = vld [vmem:[%s5] sm:$0xff]
        %v619 = vld [vmem:[#allocation4] sm:$0xff]
        %v620 = vld [vmem:[#allocation4 + $0x8] sm:$0xff]
        %v621 = vld [vmem:[#allocation4 + $0x10] sm:$0xff]
        %v622 = vld [vmem:[#allocation4 + $0x18] sm:$0xff]
        %v623 = vld [vmem:[#allocation4 + $0x20] sm:$0xff]
        %v624 = vld [vmem:[#allocation4 + $0x28] sm:$0xff]
        %v625 = vld [vmem:[#allocation4 + $0x30] sm:$0xff]
        %v626 = vld [vmem:[#allocation4 + $0x38] sm:$0xff]
        %v627 = vld [vmem:[#allocation4 + $0x40] sm:$0xff]
        %v628 = vld [vmem:[#allocation4 + $0x48] sm:$0xff]
        %v629 = vld [vmem:[#allocation4 + $0x50] sm:$0xff]
        %v630 = vld [vmem:[#allocation4 + $0x58] sm:$0xff]
        %v631 = vld [vmem:[#allocation4 + $0x60] sm:$0xff]
        %v632 = vld [vmem:[#allocation4 + $0x68] sm:$0xff]
        %v633 = vld [vmem:[#allocation4 + $0x70] sm:$0xff]
        %v634 = vld [vmem:[#allocation4 + $0x78] sm:$0xff]
        %v635 = vld [vmem:[#allocation6] sm:$0xff]
        %v636 = vld [vmem:[#allocation6 + $0x8] sm:$0xff]
        %v637 = vld [vmem:[#allocation6 + $0x10] sm:$0xff]
        %v638 = vld [vmem:[#allocation6 + $0x18] sm:$0xff]
        %v639 = vld [vmem:[#allocation6 + $0x20] sm:$0xff]
        %v640 = vld [vmem:[#allocation6 + $0x28] sm:$0xff]
        %v641 = vld [vmem:[#allocation6 + $0x30] sm:$0xff]
        %v642 = vld [vmem:[#allocation6 + $0x38] sm:$0xff]
        %v643 = vld [vmem:[#allocation6 + $0x40] sm:$0xff]
        %v644 = vld [vmem:[#allocation6 + $0x48] sm:$0xff]
        %v645 = vld [vmem:[#allocation6 + $0x50] sm:$0xff]
        %v646 = vld [vmem:[#allocation6 + $0x58] sm:$0xff]
        %v647 = vld [vmem:[#allocation6 + $0x60] sm:$0xff]
        %v648 = vld [vmem:[#allocation6 + $0x68] sm:$0xff]
        %v649 = vld [vmem:[#allocation6 + $0x70] sm:$0xff]
        %v650 = vld [vmem:[#allocation6 + $0x78] sm:$0xff]
        %v651 = vld [vmem:[%s8] sm:$0xff]
        %v652 = vld [vmem:[%s8 + $0x8] sm:$0xff]
        %v653 = vld [vmem:[%s8 + $0x10] sm:$0xff]
        %v654 = vld [vmem:[%s8 + $0x18] sm:$0xff]
        %v655 = vld [vmem:[%s8 + $0x20] sm:$0xff]
        %v656 = vld [vmem:[%s8 + $0x28] sm:$0xff]
        %v657 = vld [vmem:[%s8 + $0x30] sm:$0xff]
        %v658 = vld [vmem:[%s8 + $0x38] sm:$0xff]
        %v659 = vld [vmem:[%s8 + $0x40] sm:$0xff]
        %v660 = vld [vmem:[%s8 + $0x48] sm:$0xff]
        %v661 = vld [vmem:[%s8 + $0x50] sm:$0xff]
        %v662 = vld [vmem:[%s8 + $0x58] sm:$0xff]
        %v663 = vld [vmem:[%s8 + $0x60] sm:$0xff]
        %v664 = vld [vmem:[%s8 + $0x68] sm:$0xff]
        %v665 = vld [vmem:[%s8 + $0x70] sm:$0xff]
        %v666 = vld [vmem:[%s8 + $0x78] sm:$0xff]
        %v667 = vld [vmem:[%s9] sm:$0x1]
        %v668 = vld [vmem:[%s10] sm:$0xff]
        %v669 = vld [vmem:[%s10 + $0x8] sm:$0xff]
        %v670 = vld [vmem:[%s10 + $0x10] sm:$0xff]
        %v671 = vld [vmem:[%s10 + $0x18] sm:$0xff]
        %v672 = vld [vmem:[%s10 + $0x20] sm:$0xff]
        %v673 = vld [vmem:[%s10 + $0x28] sm:$0xff]
        %v674 = vld [vmem:[%s10 + $0x30] sm:$0xff]
        %v675 = vld [vmem:[%s10 + $0x38] sm:$0xff]
        %v676 = vld [vmem:[%s10 + $0x40] sm:$0xff]
        %v677 = vld [vmem:[%s10 + $0x48] sm:$0xff]
        %v678 = vld [vmem:[%s10 + $0x50] sm:$0xff]
        %v679 = vld [vmem:[%s10 + $0x58] sm:$0xff]
        %v680 = vld [vmem:[%s10 + $0x60] sm:$0xff]
        %v681 = vld [vmem:[%s10 + $0x68] sm:$0xff]
        %v682 = vld [vmem:[%s10 + $0x70] sm:$0xff]
        %v683 = vld [vmem:[%s10 + $0x78] sm:$0xff]
        %v684 = vld [vmem:[%s11] sm:$0x1]
        %vm685 = vcmask 130048
        %v687 = vsel %vm685, %v616, 0
        %689 = vmatprep.subr.mxu0 0.0
        %690 = vmatpush1.msra.mxu0 0.0
        %691 = vmatprep.subr.mxu0 0.0
        %692 = vmatpush1.msra.mxu0 0.0
        %693 = vmatprep.subr.mxu0 0.0
        %694 = vmatpush1.msra.mxu0 0.0
        %695 = vmatprep.subr.mxu0 0.0
        %696 = vmatpush1.msra.mxu0 0.0
        %697 = vmatprep.subr.mxu0 0.0
        %698 = vmatpush1.msra.mxu0 0.0
        %699 = vmatprep.subr.mxu0 0.0
        %700 = vmatpush1.msra.mxu0 0.0
        %701 = vmatprep.subr.mxu0 0.0
        %702 = vmatpush1.msra.mxu0 0.0
        %703 = vmatprep.subr.mxu0 0.0
        %704 = vmatpush1.msra.mxu0 0.0
        %705 = vmatprep.subr.mxu0 0.0
        %706 = vmatpush1.msra.mxu0 0.0
        %707 = vmatprep.subr.mxu0 0.0
        %708 = vmatpush1.msra.mxu0 0.0
        %709 = vmatprep.subr.mxu0 0.0
        %710 = vmatpush1.msra.mxu0 0.0
        %711 = vmatprep.subr.mxu0 0.0
        %712 = vmatpush1.msra.mxu0 0.0
        %713 = vmatprep.subr.mxu0 0.0
        %714 = vmatpush1.msra.mxu0 0.0
        %715 = vmatprep.subr.mxu0 0.0
        %716 = vmatpush1.msra.mxu0 0.0
        %717 = vmatprep.subr.mxu0 0.0
        %718 = vmatpush1.msra.mxu0 %v615
        %719 = vmatprep.subr.mxu0 0.0
        %720 = vmatpush1.msra.mxu0 %v614
        %721 = vmatprep.subr.mxu0 0.0
        %722 = vmatpush2.msra.mxu0 0.0
        %723 = vmatprep.subr.mxu0 0.0
        %724 = vmatpush2.msra.mxu0 0.0
        %725 = vmatprep.subr.mxu0 0.0
        %726 = vmatpush2.msra.mxu0 0.0
        %727 = vmatprep.subr.mxu0 0.0
        %728 = vmatpush2.msra.mxu0 0.0
        %729 = vmatprep.subr.mxu0 0.0
        %730 = vmatpush2.msra.mxu0 0.0
        %731 = vmatprep.subr.mxu0 0.0
        %732 = vmatpush2.msra.mxu0 0.0
        %733 = vmatprep.subr.mxu0 0.0
        %734 = vmatpush2.msra.mxu0 0.0
        %735 = vmatprep.subr.mxu0 0.0
        %736 = vmatpush2.msra.mxu0 0.0
        %737 = vmatprep.subr.mxu0 0.0
        %738 = vmatpush2.msra.mxu0 0.0
        %739 = vmatprep.subr.mxu0 0.0
        %740 = vmatpush2.msra.mxu0 0.0
        %741 = vmatprep.subr.mxu0 0.0
        %742 = vmatpush2.msra.mxu0 0.0
        %743 = vmatprep.subr.mxu0 0.0
        %744 = vmatpush2.msra.mxu0 0.0
        %745 = vmatprep.subr.mxu0 0.0
        %746 = vmatpush2.msra.mxu0 0.0
        %747 = vmatprep.subr.mxu0 0.0
        %748 = vmatpush2.msra.mxu0 0.0
        %749 = vmatprep.subr.mxu0 0.0
        %750 = vmatpush2.msra.mxu0 0.0
        %751 = vmatprep.subr.mxu0 0.0
        %752 = vmatpush2.msra.mxu0 0.0
        %753 = vmatprep.mubr.f32.mxu0 0.0
        %754 = vmatmul.mubr.f32.gmra.mxu0 %v687
        %v755 = vpop.f32.mrf.mxu0
        %v756 = vadd.f32 0.0, %v755
        %v757 = vpop.f32.mrf.mxu0
        %758 = vdwg.mxu0
        %v760 = vsel %vm685, %v617, 0
        %762 = vmatprep.subr.mxu0 0.0
        %763 = vmatpush1.msra.mxu0 0.0
        %764 = vmatprep.subr.mxu0 0.0
        %765 = vmatpush1.msra.mxu0 0.0
        %766 = vmatprep.subr.mxu0 0.0
        %767 = vmatpush1.msra.mxu0 0.0
        %768 = vmatprep.subr.mxu0 0.0
        %769 = vmatpush1.msra.mxu0 0.0
        %770 = vmatprep.subr.mxu0 0.0
        %771 = vmatpush1.msra.mxu0 0.0
        %772 = vmatprep.subr.mxu0 0.0
        %773 = vmatpush1.msra.mxu0 0.0
        %774 = vmatprep.subr.mxu0 0.0
        %775 = vmatpush1.msra.mxu0 0.0
        %776 = vmatprep.subr.mxu0 0.0
        %777 = vmatpush1.msra.mxu0 0.0
        %778 = vmatprep.subr.mxu0 0.0
        %779 = vmatpush1.msra.mxu0 0.0
        %780 = vmatprep.subr.mxu0 0.0
        %781 = vmatpush1.msra.mxu0 0.0
        %782 = vmatprep.subr.mxu0 0.0
        %783 = vmatpush1.msra.mxu0 0.0
        %784 = vmatprep.subr.mxu0 0.0
        %785 = vmatpush1.msra.mxu0 0.0
        %786 = vmatprep.subr.mxu0 0.0
        %787 = vmatpush1.msra.mxu0 0.0
        %788 = vmatprep.subr.mxu0 0.0
        %789 = vmatpush1.msra.mxu0 0.0
        %790 = vmatprep.subr.mxu0 0.0
        %791 = vmatpush1.msra.mxu0 %v615
        %792 = vmatprep.subr.mxu0 0.0
        %793 = vmatpush1.msra.mxu0 %v614
        %794 = vmatprep.subr.mxu0 0.0
        %795 = vmatpush2.msra.mxu0 0.0
        %796 = vmatprep.subr.mxu0 0.0
        %797 = vmatpush2.msra.mxu0 0.0
        %798 = vmatprep.subr.mxu0 0.0
        %799 = vmatpush2.msra.mxu0 0.0
        %800 = vmatprep.subr.mxu0 0.0
        %801 = vmatpush2.msra.mxu0 0.0
        %802 = vmatprep.subr.mxu0 0.0
        %803 = vmatpush2.msra.mxu0 0.0
        %804 = vmatprep.subr.mxu0 0.0
        %805 = vmatpush2.msra.mxu0 0.0
        %806 = vmatprep.subr.mxu0 0.0
        %807 = vmatpush2.msra.mxu0 0.0
        %808 = vmatprep.subr.mxu0 0.0
        %809 = vmatpush2.msra.mxu0 0.0
        %810 = vmatprep.subr.mxu0 0.0
        %811 = vmatpush2.msra.mxu0 0.0
        %812 = vmatprep.subr.mxu0 0.0
        %813 = vmatpush2.msra.mxu0 0.0
        %814 = vmatprep.subr.mxu0 0.0
        %815 = vmatpush2.msra.mxu0 0.0
        %816 = vmatprep.subr.mxu0 0.0
        %817 = vmatpush2.msra.mxu0 0.0
        %818 = vmatprep.subr.mxu0 0.0
        %819 = vmatpush2.msra.mxu0 0.0
        %820 = vmatprep.subr.mxu0 0.0
        %821 = vmatpush2.msra.mxu0 0.0
        %822 = vmatprep.subr.mxu0 0.0
        %823 = vmatpush2.msra.mxu0 0.0
        %824 = vmatprep.subr.mxu0 0.0
        %825 = vmatpush2.msra.mxu0 0.0
        %826 = vmatprep.mubr.f32.mxu0 0.0
        %827 = vmatmul.mubr.f32.gmra.mxu0 %v760
        %v828 = vpop.f32.mrf.mxu0
        %v829 = vadd.f32 0.0, %v828
        %v830 = vpop.f32.mrf.mxu0
        %831 = vdwg.mxu0
        %v833 = vsel %vm685, %v618, 0
        %835 = vmatprep.subr.mxu0 0.0
        %836 = vmatpush1.msra.mxu0 0.0
        %837 = vmatprep.subr.mxu0 0.0
        %838 = vmatpush1.msra.mxu0 0.0
        %839 = vmatprep.subr.mxu0 0.0
        %840 = vmatpush1.msra.mxu0 0.0
        %841 = vmatprep.subr.mxu0 0.0
        %842 = vmatpush1.msra.mxu0 0.0
        %843 = vmatprep.subr.mxu0 0.0
        %844 = vmatpush1.msra.mxu0 0.0
        %845 = vmatprep.subr.mxu0 0.0
        %846 = vmatpush1.msra.mxu0 0.0
        %847 = vmatprep.subr.mxu0 0.0
        %848 = vmatpush1.msra.mxu0 0.0
        %849 = vmatprep.subr.mxu0 0.0
        %850 = vmatpush1.msra.mxu0 0.0
        %851 = vmatprep.subr.mxu0 0.0
        %852 = vmatpush1.msra.mxu0 0.0
        %853 = vmatprep.subr.mxu0 0.0
        %854 = vmatpush1.msra.mxu0 0.0
        %855 = vmatprep.subr.mxu0 0.0
        %856 = vmatpush1.msra.mxu0 0.0
        %857 = vmatprep.subr.mxu0 0.0
        %858 = vmatpush1.msra.mxu0 0.0
        %859 = vmatprep.subr.mxu0 0.0
        %860 = vmatpush1.msra.mxu0 0.0
        %861 = vmatprep.subr.mxu0 0.0
        %862 = vmatpush1.msra.mxu0 0.0
        %863 = vmatprep.subr.mxu0 0.0
        %864 = vmatpush1.msra.mxu0 %v615
        %865 = vmatprep.subr.mxu0 0.0
        %866 = vmatpush1.msra.mxu0 %v614
        %867 = vmatprep.subr.mxu0 0.0
        %868 = vmatpush2.msra.mxu0 0.0
        %869 = vmatprep.subr.mxu0 0.0
        %870 = vmatpush2.msra.mxu0 0.0
        %871 = vmatprep.subr.mxu0 0.0
        %872 = vmatpush2.msra.mxu0 0.0
        %873 = vmatprep.subr.mxu0 0.0
        %874 = vmatpush2.msra.mxu0 0.0
        %875 = vmatprep.subr.mxu0 0.0
        %876 = vmatpush2.msra.mxu0 0.0
        %877 = vmatprep.subr.mxu0 0.0
        %878 = vmatpush2.msra.mxu0 0.0
        %879 = vmatprep.subr.mxu0 0.0
        %880 = vmatpush2.msra.mxu0 0.0
        %881 = vmatprep.subr.mxu0 0.0
        %882 = vmatpush2.msra.mxu0 0.0
        %883 = vmatprep.subr.mxu0 0.0
        %884 = vmatpush2.msra.mxu0 0.0
        %885 = vmatprep.subr.mxu0 0.0
        %886 = vmatpush2.msra.mxu0 0.0
        %887 = vmatprep.subr.mxu0 0.0
        %888 = vmatpush2.msra.mxu0 0.0
        %889 = vmatprep.subr.mxu0 0.0
        %890 = vmatpush2.msra.mxu0 0.0
        %891 = vmatprep.subr.mxu0 0.0
        %892 = vmatpush2.msra.mxu0 0.0
        %893 = vmatprep.subr.mxu0 0.0
        %894 = vmatpush2.msra.mxu0 0.0
        %895 = vmatprep.subr.mxu0 0.0
        %896 = vmatpush2.msra.mxu0 0.0
        %897 = vmatprep.subr.mxu0 0.0
        %898 = vmatpush2.msra.mxu0 0.0
        %899 = vmatprep.mubr.f32.mxu0 0.0
        %900 = vmatmul.mubr.f32.gmra.mxu0 %v833
        %v901 = vpop.f32.mrf.mxu0
        %v902 = vadd.f32 0.0, %v901
        %v903 = vpop.f32.mrf.mxu0
        %904 = vdwg.mxu0
        %905 = vmatprep.subr.mxu0 0.0
        %906 = vmatpush1.msra.mxu0 %v650
        %907 = vmatprep.subr.mxu0 0.0
        %908 = vmatpush1.msra.mxu0 %v649
        %909 = vmatprep.subr.mxu0 0.0
        %910 = vmatpush1.msra.mxu0 %v648
        %911 = vmatprep.subr.mxu0 0.0
        %912 = vmatpush1.msra.mxu0 %v647
        %913 = vmatprep.subr.mxu0 0.0
        %914 = vmatpush1.msra.mxu0 %v646
        %915 = vmatprep.subr.mxu0 0.0
        %916 = vmatpush1.msra.mxu0 %v645
        %917 = vmatprep.subr.mxu0 0.0
        %918 = vmatpush1.msra.mxu0 %v644
        %919 = vmatprep.subr.mxu0 0.0
        %920 = vmatpush1.msra.mxu0 %v643
        %921 = vmatprep.subr.mxu0 0.0
        %922 = vmatpush1.msra.mxu0 %v642
        %923 = vmatprep.subr.mxu0 0.0
        %924 = vmatpush1.msra.mxu0 %v641
        %925 = vmatprep.subr.mxu0 0.0
        %926 = vmatpush1.msra.mxu0 %v640
        %927 = vmatprep.subr.mxu0 0.0
        %928 = vmatpush1.msra.mxu0 %v639
        %929 = vmatprep.subr.mxu0 0.0
        %930 = vmatpush1.msra.mxu0 %v638
        %931 = vmatprep.subr.mxu0 0.0
        %932 = vmatpush1.msra.mxu0 %v637
        %933 = vmatprep.subr.mxu0 0.0
        %934 = vmatpush1.msra.mxu0 %v636
        %935 = vmatprep.subr.mxu0 0.0
        %936 = vmatpush1.msra.mxu0 %v635
        %937 = vmatprep.subr.mxu0 0.0
        %938 = vmatpush2.msra.mxu0 0.0
        %939 = vmatprep.subr.mxu0 0.0
        %940 = vmatpush2.msra.mxu0 0.0
        %941 = vmatprep.subr.mxu0 0.0
        %942 = vmatpush2.msra.mxu0 0.0
        %943 = vmatprep.subr.mxu0 0.0
        %944 = vmatpush2.msra.mxu0 0.0
        %945 = vmatprep.subr.mxu0 0.0
        %946 = vmatpush2.msra.mxu0 0.0
        %947 = vmatprep.subr.mxu0 0.0
        %948 = vmatpush2.msra.mxu0 0.0
        %949 = vmatprep.subr.mxu0 0.0
        %950 = vmatpush2.msra.mxu0 0.0
        %951 = vmatprep.subr.mxu0 0.0
        %952 = vmatpush2.msra.mxu0 0.0
        %953 = vmatprep.subr.mxu0 0.0
        %954 = vmatpush2.msra.mxu0 0.0
        %955 = vmatprep.subr.mxu0 0.0
        %956 = vmatpush2.msra.mxu0 0.0
        %957 = vmatprep.subr.mxu0 0.0
        %958 = vmatpush2.msra.mxu0 0.0
        %959 = vmatprep.subr.mxu0 0.0
        %960 = vmatpush2.msra.mxu0 0.0
        %961 = vmatprep.subr.mxu0 0.0
        %962 = vmatpush2.msra.mxu0 0.0
        %963 = vmatprep.subr.mxu0 0.0
        %964 = vmatpush2.msra.mxu0 0.0
        %965 = vmatprep.subr.mxu0 0.0
        %966 = vmatpush2.msra.mxu0 0.0
        %967 = vmatprep.subr.mxu0 0.0
        %968 = vmatpush2.msra.mxu0 0.0
        %969 = vmatprep.mubr.f32.mxu0 0.0
        %970 = vmatmul.mubr.f32.gmra.mxu0 %v829
        %v971 = vpop.f32.mrf.mxu0
        %v972 = vadd.f32 0.0, %v971
        %v973 = vpop.f32.mrf.mxu0
        %974 = vdwg.mxu0
        %975 = vmatprep.subr.mxu0 0.0
        %976 = vmatpush1.msra.mxu0 %v634
        %977 = vmatprep.subr.mxu0 0.0
        %978 = vmatpush1.msra.mxu0 %v633
        %979 = vmatprep.subr.mxu0 0.0
        %980 = vmatpush1.msra.mxu0 %v632
        %981 = vmatprep.subr.mxu0 0.0
        %982 = vmatpush1.msra.mxu0 %v631
        %983 = vmatprep.subr.mxu0 0.0
        %984 = vmatpush1.msra.mxu0 %v630
        %985 = vmatprep.subr.mxu0 0.0
        %986 = vmatpush1.msra.mxu0 %v629
        %987 = vmatprep.subr.mxu0 0.0
        %988 = vmatpush1.msra.mxu0 %v628
        %989 = vmatprep.subr.mxu0 0.0
        %990 = vmatpush1.msra.mxu0 %v627
        %991 = vmatprep.subr.mxu0 0.0
        %992 = vmatpush1.msra.mxu0 %v626
        %993 = vmatprep.subr.mxu0 0.0
        %994 = vmatpush1.msra.mxu0 %v625
        %995 = vmatprep.subr.mxu0 0.0
        %996 = vmatpush1.msra.mxu0 %v624
        %997 = vmatprep.subr.mxu0 0.0
        %998 = vmatpush1.msra.mxu0 %v623
        %999 = vmatprep.subr.mxu0 0.0
        %1000 = vmatpush1.msra.mxu0 %v622
        %1001 = vmatprep.subr.mxu0 0.0
        %1002 = vmatpush1.msra.mxu0 %v621
        %1003 = vmatprep.subr.mxu0 0.0
        %1004 = vmatpush1.msra.mxu0 %v620
        %1005 = vmatprep.subr.mxu0 0.0
        %1006 = vmatpush1.msra.mxu0 %v619
        %1007 = vmatprep.subr.mxu0 0.0
        %1008 = vmatpush2.msra.mxu0 0.0
        %1009 = vmatprep.subr.mxu0 0.0
        %1010 = vmatpush2.msra.mxu0 0.0
        %1011 = vmatprep.subr.mxu0 0.0
        %1012 = vmatpush2.msra.mxu0 0.0
        %1013 = vmatprep.subr.mxu0 0.0
        %1014 = vmatpush2.msra.mxu0 0.0
        %1015 = vmatprep.subr.mxu0 0.0
        %1016 = vmatpush2.msra.mxu0 0.0
        %1017 = vmatprep.subr.mxu0 0.0
        %1018 = vmatpush2.msra.mxu0 0.0
        %1019 = vmatprep.subr.mxu0 0.0
        %1020 = vmatpush2.msra.mxu0 0.0
        %1021 = vmatprep.subr.mxu0 0.0
        %1022 = vmatpush2.msra.mxu0 0.0
        %1023 = vmatprep.subr.mxu0 0.0
        %1024 = vmatpush2.msra.mxu0 0.0
        %1025 = vmatprep.subr.mxu0 0.0
        %1026 = vmatpush2.msra.mxu0 0.0
        %1027 = vmatprep.subr.mxu0 0.0
        %1028 = vmatpush2.msra.mxu0 0.0
        %1029 = vmatprep.subr.mxu0 0.0
        %1030 = vmatpush2.msra.mxu0 0.0
        %1031 = vmatprep.subr.mxu0 0.0
        %1032 = vmatpush2.msra.mxu0 0.0
        %1033 = vmatprep.subr.mxu0 0.0
        %1034 = vmatpush2.msra.mxu0 0.0
        %1035 = vmatprep.subr.mxu0 0.0
        %1036 = vmatpush2.msra.mxu0 0.0
        %1037 = vmatprep.subr.mxu0 0.0
        %1038 = vmatpush2.msra.mxu0 0.0
        %1039 = vmatprep.mubr.f32.mxu0 0.0
        %1040 = vmatmul.mubr.f32.gmra.mxu0 %v756
        %v1041 = vpop.f32.mrf.mxu0
        %v1042 = vadd.f32 %v972, %v1041
        %v1043 = vpop.f32.mrf.mxu0
        %1044 = vdwg.mxu0
        %1045 = vmatprep.subr.mxu0 0.0
        %1046 = vmatpush1.msra.mxu0 %v666
        %1047 = vmatprep.subr.mxu0 0.0
        %1048 = vmatpush1.msra.mxu0 %v665
        %1049 = vmatprep.subr.mxu0 0.0
        %1050 = vmatpush1.msra.mxu0 %v664
        %1051 = vmatprep.subr.mxu0 0.0
        %1052 = vmatpush1.msra.mxu0 %v663
        %1053 = vmatprep.subr.mxu0 0.0
        %1054 = vmatpush1.msra.mxu0 %v662
        %1055 = vmatprep.subr.mxu0 0.0
        %1056 = vmatpush1.msra.mxu0 %v661
        %1057 = vmatprep.subr.mxu0 0.0
        %1058 = vmatpush1.msra.mxu0 %v660
        %1059 = vmatprep.subr.mxu0 0.0
        %1060 = vmatpush1.msra.mxu0 %v659
        %1061 = vmatprep.subr.mxu0 0.0
        %1062 = vmatpush1.msra.mxu0 %v658
        %1063 = vmatprep.subr.mxu0 0.0
        %1064 = vmatpush1.msra.mxu0 %v657
        %1065 = vmatprep.subr.mxu0 0.0
        %1066 = vmatpush1.msra.mxu0 %v656
        %1067 = vmatprep.subr.mxu0 0.0
        %1068 = vmatpush1.msra.mxu0 %v655
        %1069 = vmatprep.subr.mxu0 0.0
        %1070 = vmatpush1.msra.mxu0 %v654
        %1071 = vmatprep.subr.mxu0 0.0
        %1072 = vmatpush1.msra.mxu0 %v653
        %1073 = vmatprep.subr.mxu0 0.0
        %1074 = vmatpush1.msra.mxu0 %v652
        %1075 = vmatprep.subr.mxu0 0.0
        %1076 = vmatpush1.msra.mxu0 %v651
        %1077 = vmatprep.subr.mxu0 0.0
        %1078 = vmatpush2.msra.mxu0 0.0
        %1079 = vmatprep.subr.mxu0 0.0
        %1080 = vmatpush2.msra.mxu0 0.0
        %1081 = vmatprep.subr.mxu0 0.0
        %1082 = vmatpush2.msra.mxu0 0.0
        %1083 = vmatprep.subr.mxu0 0.0
        %1084 = vmatpush2.msra.mxu0 0.0
        %1085 = vmatprep.subr.mxu0 0.0
        %1086 = vmatpush2.msra.mxu0 0.0
        %1087 = vmatprep.subr.mxu0 0.0
        %1088 = vmatpush2.msra.mxu0 0.0
        %1089 = vmatprep.subr.mxu0 0.0
        %1090 = vmatpush2.msra.mxu0 0.0
        %1091 = vmatprep.subr.mxu0 0.0
        %1092 = vmatpush2.msra.mxu0 0.0
        %1093 = vmatprep.subr.mxu0 0.0
        %1094 = vmatpush2.msra.mxu0 0.0
        %1095 = vmatprep.subr.mxu0 0.0
        %1096 = vmatpush2.msra.mxu0 0.0
        %1097 = vmatprep.subr.mxu0 0.0
        %1098 = vmatpush2.msra.mxu0 0.0
        %1099 = vmatprep.subr.mxu0 0.0
        %1100 = vmatpush2.msra.mxu0 0.0
        %1101 = vmatprep.subr.mxu0 0.0
        %1102 = vmatpush2.msra.mxu0 0.0
        %1103 = vmatprep.subr.mxu0 0.0
        %1104 = vmatpush2.msra.mxu0 0.0
        %1105 = vmatprep.subr.mxu0 0.0
        %1106 = vmatpush2.msra.mxu0 0.0
        %1107 = vmatprep.subr.mxu0 0.0
        %1108 = vmatpush2.msra.mxu0 0.0
        %1109 = vmatprep.mubr.f32.mxu0 0.0
        %1110 = vmatmul.mubr.f32.gmra.mxu0 %v902
        %v1111 = vpop.f32.mrf.mxu0
        %v1112 = vadd.f32 0.0, %v1111
        %v1113 = vpop.f32.mrf.mxu0
        %1114 = vdwg.mxu0
        %v1115 = vadd.f32 %v1042, %v1112
        %v1117 = vlaneseq
        %v1118 = vshrl.u32 %v1117, 7
        %v1119 = vsub.s32 0, %v1118
        %v1120 = vrot.slane %v667, %v1119
        %v1122 = vadd.f32 %v1120, %v1115
        %vm1123 = vcmp.ge.f32.partialorder %v1122, 0.0
        %v1124 = vmul.f32 %v1122, 0.2
        %v1125 = vsel %vm1123, %v1122, %v1124
        %v1127 = vlaneseq
        %v1128 = vshrl.u32 %v1127, 7
        %v1129 = vsub.s32 0, %v1128
        %v1130 = vrot.slane %v684, %v1129
        %1132 = vmatprep.subr.mxu0 0.0
        %1133 = vmatpush1.msra.mxu0 %v683
        %1134 = vmatprep.subr.mxu0 0.0
        %1135 = vmatpush1.msra.mxu0 %v682
        %1136 = vmatprep.subr.mxu0 0.0
        %1137 = vmatpush1.msra.mxu0 %v681
        %1138 = vmatprep.subr.mxu0 0.0
        %1139 = vmatpush1.msra.mxu0 %v680
        %1140 = vmatprep.subr.mxu0 0.0
        %1141 = vmatpush1.msra.mxu0 %v679
        %1142 = vmatprep.subr.mxu0 0.0
        %1143 = vmatpush1.msra.mxu0 %v678
        %1144 = vmatprep.subr.mxu0 0.0
        %1145 = vmatpush1.msra.mxu0 %v677
        %1146 = vmatprep.subr.mxu0 0.0
        %1147 = vmatpush1.msra.mxu0 %v676
        %1148 = vmatprep.subr.mxu0 0.0
        %1149 = vmatpush1.msra.mxu0 %v675
        %1150 = vmatprep.subr.mxu0 0.0
        %1151 = vmatpush1.msra.mxu0 %v674
        %1152 = vmatprep.subr.mxu0 0.0
        %1153 = vmatpush1.msra.mxu0 %v673
        %1154 = vmatprep.subr.mxu0 0.0
        %1155 = vmatpush1.msra.mxu0 %v672
        %1156 = vmatprep.subr.mxu0 0.0
        %1157 = vmatpush1.msra.mxu0 %v671
        %1158 = vmatprep.subr.mxu0 0.0
        %1159 = vmatpush1.msra.mxu0 %v670
        %1160 = vmatprep.subr.mxu0 0.0
        %1161 = vmatpush1.msra.mxu0 %v669
        %1162 = vmatprep.subr.mxu0 0.0
        %1163 = vmatpush1.msra.mxu0 %v668
        %1164 = vmatprep.subr.mxu0 0.0
        %1165 = vmatpush2.msra.mxu0 0.0
        %1166 = vmatprep.subr.mxu0 0.0
        %1167 = vmatpush2.msra.mxu0 0.0
        %1168 = vmatprep.subr.mxu0 0.0
        %1169 = vmatpush2.msra.mxu0 0.0
        %1170 = vmatprep.subr.mxu0 0.0
        %1171 = vmatpush2.msra.mxu0 0.0
        %1172 = vmatprep.subr.mxu0 0.0
        %1173 = vmatpush2.msra.mxu0 0.0
        %1174 = vmatprep.subr.mxu0 0.0
        %1175 = vmatpush2.msra.mxu0 0.0
        %1176 = vmatprep.subr.mxu0 0.0
        %1177 = vmatpush2.msra.mxu0 0.0
        %1178 = vmatprep.subr.mxu0 0.0
        %1179 = vmatpush2.msra.mxu0 0.0
        %1180 = vmatprep.subr.mxu0 0.0
        %1181 = vmatpush2.msra.mxu0 0.0
        %1182 = vmatprep.subr.mxu0 0.0
        %1183 = vmatpush2.msra.mxu0 0.0
        %1184 = vmatprep.subr.mxu0 0.0
        %1185 = vmatpush2.msra.mxu0 0.0
        %1186 = vmatprep.subr.mxu0 0.0
        %1187 = vmatpush2.msra.mxu0 0.0
        %1188 = vmatprep.subr.mxu0 0.0
        %1189 = vmatpush2.msra.mxu0 0.0
        %1190 = vmatprep.subr.mxu0 0.0
        %1191 = vmatpush2.msra.mxu0 0.0
        %1192 = vmatprep.subr.mxu0 0.0
        %1193 = vmatpush2.msra.mxu0 0.0
        %1194 = vmatprep.subr.mxu0 0.0
        %1195 = vmatpush2.msra.mxu0 0.0
        %1196 = vmatprep.mubr.f32.mxu0 0.0
        %1197 = vmatmul.mubr.f32.gmra.mxu0 %v1125
        %v1198 = vpop.f32.mrf.mxu0
        %v1199 = vadd.f32 %v1130, %v1198
        %v1200 = vpop.f32.mrf.mxu0
        %1201 = vdwg.mxu0
        %vm1202 = vcmp.ge.f32.partialorder %v1199, 0.0
        %v1203 = vmul.f32 %v1199, 0.2
        %v1204 = vsel %vm1202, %v1199, %v1203
        %v1205 = vadd.f32 %v829, %v1204
        %v1206 = vld [vmem:[%s12] sm:$0xff]
        %v1207 = vld [vmem:[%s12 + $0x8] sm:$0xff]
        %v1208 = vld [vmem:[%s12 + $0x10] sm:$0xff]
        %v1209 = vld [vmem:[%s12 + $0x18] sm:$0xff]
        %v1210 = vld [vmem:[%s12 + $0x20] sm:$0xff]
        %v1211 = vld [vmem:[%s12 + $0x28] sm:$0xff]
        %v1212 = vld [vmem:[%s12 + $0x30] sm:$0xff]
        %v1213 = vld [vmem:[%s12 + $0x38] sm:$0xff]
        %v1214 = vld [vmem:[%s12 + $0x40] sm:$0xff]
        %v1215 = vld [vmem:[%s12 + $0x48] sm:$0xff]
        %v1216 = vld [vmem:[%s12 + $0x50] sm:$0xff]
        %v1217 = vld [vmem:[%s12 + $0x58] sm:$0xff]
        %v1218 = vld [vmem:[%s12 + $0x60] sm:$0xff]
        %v1219 = vld [vmem:[%s12 + $0x68] sm:$0xff]
        %v1220 = vld [vmem:[%s12 + $0x70] sm:$0xff]
        %v1221 = vld [vmem:[%s12 + $0x78] sm:$0xff]
        %v1222 = vld [vmem:[%s13] sm:$0x1]
        %v1224 = vlaneseq
        %v1225 = vshrl.u32 %v1224, 7
        %v1226 = vsub.s32 0, %v1225
        %v1227 = vrot.slane %v1222, %v1226
        %1229 = vmatprep.subr.mxu0 0.0
        %1230 = vmatpush1.msra.mxu0 %v1221
        %1231 = vmatprep.subr.mxu0 0.0
        %1232 = vmatpush1.msra.mxu0 %v1220
        %1233 = vmatprep.subr.mxu0 0.0
        %1234 = vmatpush1.msra.mxu0 %v1219
        %1235 = vmatprep.subr.mxu0 0.0
        %1236 = vmatpush1.msra.mxu0 %v1218
        %1237 = vmatprep.subr.mxu0 0.0
        %1238 = vmatpush1.msra.mxu0 %v1217
        %1239 = vmatprep.subr.mxu0 0.0
        %1240 = vmatpush1.msra.mxu0 %v1216
        %1241 = vmatprep.subr.mxu0 0.0
        %1242 = vmatpush1.msra.mxu0 %v1215
        %1243 = vmatprep.subr.mxu0 0.0
        %1244 = vmatpush1.msra.mxu0 %v1214
        %1245 = vmatprep.subr.mxu0 0.0
        %1246 = vmatpush1.msra.mxu0 %v1213
        %1247 = vmatprep.subr.mxu0 0.0
        %1248 = vmatpush1.msra.mxu0 %v1212
        %1249 = vmatprep.subr.mxu0 0.0
        %1250 = vmatpush1.msra.mxu0 %v1211
        %1251 = vmatprep.subr.mxu0 0.0
        %1252 = vmatpush1.msra.mxu0 %v1210
        %1253 = vmatprep.subr.mxu0 0.0
        %1254 = vmatpush1.msra.mxu0 %v1209
        %1255 = vmatprep.subr.mxu0 0.0
        %1256 = vmatpush1.msra.mxu0 %v1208
        %1257 = vmatprep.subr.mxu0 0.0
        %1258 = vmatpush1.msra.mxu0 %v1207
        %1259 = vmatprep.subr.mxu0 0.0
        %1260 = vmatpush1.msra.mxu0 %v1206
        %1261 = vmatprep.subr.mxu0 0.0
        %1262 = vmatpush2.msra.mxu0 0.0
        %1263 = vmatprep.subr.mxu0 0.0
        %1264 = vmatpush2.msra.mxu0 0.0
        %1265 = vmatprep.subr.mxu0 0.0
        %1266 = vmatpush2.msra.mxu0 0.0
        %1267 = vmatprep.subr.mxu0 0.0
        %1268 = vmatpush2.msra.mxu0 0.0
        %1269 = vmatprep.subr.mxu0 0.0
        %1270 = vmatpush2.msra.mxu0 0.0
        %1271 = vmatprep.subr.mxu0 0.0
        %1272 = vmatpush2.msra.mxu0 0.0
        %1273 = vmatprep.subr.mxu0 0.0
        %1274 = vmatpush2.msra.mxu0 0.0
        %1275 = vmatprep.subr.mxu0 0.0
        %1276 = vmatpush2.msra.mxu0 0.0
        %1277 = vmatprep.subr.mxu0 0.0
        %1278 = vmatpush2.msra.mxu0 0.0
        %1279 = vmatprep.subr.mxu0 0.0
        %1280 = vmatpush2.msra.mxu0 0.0
        %1281 = vmatprep.subr.mxu0 0.0
        %1282 = vmatpush2.msra.mxu0 0.0
        %1283 = vmatprep.subr.mxu0 0.0
        %1284 = vmatpush2.msra.mxu0 0.0
        %1285 = vmatprep.subr.mxu0 0.0
        %1286 = vmatpush2.msra.mxu0 0.0
        %1287 = vmatprep.subr.mxu0 0.0
        %1288 = vmatpush2.msra.mxu0 0.0
        %1289 = vmatprep.subr.mxu0 0.0
        %1290 = vmatpush2.msra.mxu0 0.0
        %1291 = vmatprep.subr.mxu0 0.0
        %1292 = vmatpush2.msra.mxu0 0.0
        %1293 = vmatprep.mubr.f32.mxu0 0.0
        %1294 = vmatmul.mubr.f32.gmra.mxu0 %v1205
        %v1295 = vpop.f32.mrf.mxu0
        %v1296 = vadd.f32 %v1227, %v1295
        %v1297 = vpop.f32.mrf.mxu0
        %1298 = vdwg.mxu0
        %1299 = vst [vmem:[%s509] sm:$0xff] %v1296
        %p1300 = scmp.lt.s32.totalorder %s27, 1
        %s1301 = scalar_select %p1300, %s27, 1
        %s1302 = smul.addr %s1301, 8
        %s1303 = scalar_lea.vmem %s14, %s1302
        // Predicated region
        $region89: #{forward.1} parent=75 // pred_check
          %p1304 = pneg %p344
        $region90: #{forward.1} parent=75 // pred_check_branch
          %1306 = sbr.rel (%p1304) target = $region92
        $region91: #{forward.1} parent=75 // pred_region
          _
        $region92: #{forward.1} parent=75 // pred_fallthru
          _
      $region76: #{forward.1} parent=5 // pred_fallthru
        _
      %p1307 = scmp.le.s32.totalorder 2, %s22
      // Predicated region
      $region93: #{forward.1} parent=5 // pred_check
        %p1308 = pneg %p1307
      $region94: #{forward.1} parent=5 // pred_check_branch
        %1310 = sbr.rel (%p1308) target = $region96
      $region95: #{forward.1} parent=5 // pred_region
        %s1311 = ssub.s32 %s22, 2
        // Predicated region
        $region97: #{forward.1} parent=95 // pred_check
          %p1312 = pneg %p350
        $region98: #{forward.1} parent=95 // pred_check_branch
          %1314 = sbr.rel (%p1312) target = $region100
        $region99: #{forward.1} parent=95 // pred_region
          %p1315 = scmp.lt.s32.totalorder %s28, 1
          %s1316 = scalar_select %p1315, %s28, 1
          %s1317 = smul.addr %s1316, 8
          %s1318 = scalar_lea.vmem %s14, %s1317
        $region100: #{forward.1} parent=95 // pred_fallthru
          _
      $region96: #{forward.1} parent=5 // pred_fallthru
        _
    $region6: #{forward.1} parent=1 // loop_footer
      %s26 = sadd.s32 1, %s22
    $region7: #{forward.1} parent=1 // loop_footer_branch
      %21 = sbr.rel target = $region3
    $region8: #{forward.1} parent=1 // loop_exit
      _
    %1319 = vsyncpa [#allocation3], 1
    %s1320 = scalar_lea.sflag [#allocation3], 1
    %1321 = vsyncpa %s1320, 1
    %1322 = vsyncpa [#allocation5], 1

</llo_original>
